<compile_context>
chip_gen: v7x
topology: tpu7x:2x2x1
jax: 0.10.0
libtpu: 0.0.40
codegen_flags: <defaults>
</compile_context>

<pallas_src>
import functools
import math

import jax
import jax.numpy as jnp
from jax.experimental import pallas as pl
from jax.experimental.pallas import tpu as pltpu

_LN_EPS = 1e-5


def _layer_norm(x, gamma, beta):
    mu = jnp.mean(x, axis=-1, keepdims=True)
    xc = x - mu
    var = jnp.mean(xc * xc, axis=-1, keepdims=True)
    return xc * jax.lax.rsqrt(var + _LN_EPS) * gamma + beta


def _encoder_layer_kernel(
    x_ref, pos_ref,
    wq_ref, bq_ref, wk_ref, bk_ref, wv_ref, bv_ref, wo_ref, bo_ref,
    w1_ref, b1_ref, w2_ref, b2_ref,
    g1_ref, be1_ref, g2_ref, be2_ref,
    out_ref,
    attn_sc,
    *, nhead: int, head_dim: int, ffn_chunk: int, s_valid: int,
):
    """Fused TransformerEncoderLayer forward for one batch element (S_pad, D)."""
    f32, bf16 = jnp.float32, jnp.bfloat16

    x = x_ref[0].astype(f32)                           # (S, D) residual path, f32
    S, D = x.shape
    qk_in = (x + pos_ref[0].astype(f32)).astype(bf16)  # q = k = src + pos
    x_bf = x.astype(bf16)

    # --- self-attention: QKV projections (bf16 MXU operands, f32 accumulation).
    # The 1/sqrt(head_dim) attention scale is folded into wq / bq.
    q = jnp.dot(qk_in, wq_ref[...], preferred_element_type=f32) + bq_ref[...]
    k = jnp.dot(qk_in, wk_ref[...], preferred_element_type=f32) + bk_ref[...]
    v = jnp.dot(x_bf, wv_ref[...], preferred_element_type=f32) + bv_ref[...]
    q, k, v = q.astype(bf16), k.astype(bf16), v.astype(bf16)

    # Key-padding mask (sequence is padded to a sublane multiple in the wrapper).
    if s_valid < S:
        key_valid = jax.lax.broadcasted_iota(jnp.int32, (S, S), 1) < s_valid

    # --- per-head scaled dot-product attention.  Head outputs are stored into a
    # bf16 VMEM scratch at static lane offsets -> no concatenate relayout.
    for h in range(nhead):
        lo = h * head_dim
        qh = q[:, lo:lo + head_dim]                    # (S, Dh) bf16
        kh = k[:, lo:lo + head_dim]
        vh = v[:, lo:lo + head_dim]
        s = jax.lax.dot_general(qh, kh, (((1,), (1,)), ((), ())),
                                preferred_element_type=f32)   # (S, S) f32
        if s_valid < S:
            s = jnp.where(key_valid, s, -1e30)
        p = jnp.exp(s - jnp.max(s, axis=-1, keepdims=True))   # f32 softmax stats
        denom = jnp.sum(p, axis=-1, keepdims=True)
        o = jnp.dot(p.astype(bf16), vh, preferred_element_type=f32)
        # Normalize AFTER the PV matmul: S*Dh VPU muls + an EUP reciprocal
        # instead of S*S divides on the probability matrix.
        o = o * pl.reciprocal(denom, approx=True)
        attn_sc[:, lo:lo + head_dim] = o.astype(bf16)

    attn = jnp.dot(attn_sc[...], wo_ref[...],
                   preferred_element_type=f32) + bo_ref[...]

    # --- residual + LayerNorm1 (dropout1 = identity in eval)
    x = _layer_norm(x + attn, g1_ref[...], be1_ref[...])

    # --- feed-forward: linear2(relu(linear1(x))), chunked over dim_feedforward
    # so the (S, F) hidden activation never lives in full in VMEM.
    xb = x.astype(bf16)
    ff = jnp.zeros((S, D), f32)
    n_chunks = w1_ref.shape[1] // ffn_chunk
    for c in range(n_chunks):
        lo = c * ffn_chunk
        h1 = jnp.dot(xb, w1_ref[:, lo:lo + ffn_chunk],
                     preferred_element_type=f32) + b1_ref[:, lo:lo + ffn_chunk]
        h1 = jnp.maximum(h1, 0.0).astype(bf16)
        ff = ff + jnp.dot(h1, w2_ref[lo:lo + ffn_chunk, :],
                          preferred_element_type=f32)
    ff = ff + b2_ref[...]

    # --- residual + LayerNorm2
    x = _layer_norm(x + ff, g2_ref[...], be2_ref[...])
    out_ref[0] = x.astype(out_ref.dtype)


def _vmem_limit_bytes(S, D, F, H, ffn_chunk, io_bytes):
    """Footprint-based scoped-VMEM budget (with headroom)."""
    weights = 2 * (4 * D * D + 2 * D * F)               # bf16, single-buffered
    small = 4 * (7 * D + F)                              # f32 biases + LN params
    blocks = 2 * 3 * S * D * io_bytes                    # double-buffered x/pos/out
    live = (4 * (7 * S * D + 2 * S * S + S * ffn_chunk)  # f32 intermediates
            + 2 * (5 * S * D + S * S + S * ffn_chunk))   # bf16 copies + scratch
    est = weights + small + blocks + live
    # 2x headroom, floor at the common 32 MiB scoped default, cap below v7x's
    # 64 MiB physical VMEM so one budget is safe on v5e / v6e / v7x.
    return int(min(max(2 * est, 32 * 1024 * 1024), 64 * 1024 * 1024))


@functools.partial(jax.jit, static_argnames=("nhead",))
def encoder_layer_forward(src, pos, kp, nhead):
    """src, pos: (B, S, D) batch-first (avoids HBM transposes). Returns (B, S, D)."""
    B, S, D = src.shape
    F = kp["w1"].shape[1]
    head_dim = D // nhead

    # Pad the sequence to a sublane-aligned length; padded keys are masked to
    # -inf inside the kernel and padded query rows sliced off below.
    S_pad = -(-S // 8) * 8
    if S_pad != S:
        padcfg = ((0, 0), (0, S_pad - S), (0, 0))
        x, ps = jnp.pad(src, padcfg), jnp.pad(pos, padcfg)
    else:
        x, ps = src, pos

    ffn_chunk = next((c for c in (512, 256, 128, 64) if F % c == 0), F)

    kernel = functools.partial(
        _encoder_layer_kernel, nhead=nhead, head_dim=head_dim,
        ffn_chunk=ffn_chunk, s_valid=S)

    def bmap(b):      # batch-sliced operands
        return (b, 0, 0)

    def wmap(b):      # batch-invariant operands (weights / biases / LN params)
        return (0, 0)

    def wspec(shape):  # resident weights: constant index_map + single buffering
        return pl.BlockSpec(shape, wmap, pipeline_mode=pl.Buffered(1))

    grid_spec = pltpu.PrefetchScalarGridSpec(
        num_scalar_prefetch=0,
        grid=(B,),
        in_specs=[
            pl.BlockSpec((1, S_pad, D), bmap),                 # src
            pl.BlockSpec((1, S_pad, D), bmap),                 # pos
            wspec((D, D)), wspec((1, D)),                      # Wq, bq (scaled)
            wspec((D, D)), wspec((1, D)),                      # Wk, bk
            wspec((D, D)), wspec((1, D)),                      # Wv, bv
            wspec((D, D)), wspec((1, D)),                      # Wo, bo
            wspec((D, F)), wspec((1, F)),                      # linear1
            wspec((F, D)), wspec((1, D)),                      # linear2
            wspec((1, D)), wspec((1, D)),                      # LN1 g, b
            wspec((1, D)), wspec((1, D)),                      # LN2 g, b
        ],
        out_specs=pl.BlockSpec((1, S_pad, D), bmap),
        scratch_shapes=[pltpu.VMEM((S_pad, D), jnp.bfloat16)],  # merged heads
    )

    out = pl.pallas_call(
        kernel,
        out_shape=jax.ShapeDtypeStruct((B, S_pad, D), src.dtype),
        grid_spec=grid_spec,
        compiler_params=pltpu.CompilerParams(
            dimension_semantics=("parallel",),
            vmem_limit_bytes=_vmem_limit_bytes(
                S_pad, D, F, nhead, ffn_chunk, src.dtype.itemsize)),
    )(x, ps,
      kp["wq"], kp["bq"], kp["wk"], kp["bk"], kp["wv"], kp["bv"],
      kp["wo"], kp["bo"], kp["w1"], kp["b1"], kp["w2"], kp["b2"],
      kp["g1"], kp["be1"], kp["g2"], kp["be2"])

    return out[:, :S, :] if S_pad != S else out


def init_encoder_layer_params(key, d_model, nhead, dim_feedforward,
                              dtype=jnp.float32):
    """Deterministic synthetic params in PyTorch layout (W: (out, in))."""
    def linear(k, n_in, n_out):
        kw, kb = jax.random.split(k)
        bound = 1.0 / math.sqrt(n_in)
        W = jax.random.uniform(kw, (n_out, n_in), dtype, -bound, bound)
        b = jax.random.uniform(kb, (n_out,), dtype, -bound, bound)
        return W, b

    ks = jax.random.split(key, 10)
    Wq, bq = linear(ks[0], d_model, d_model)
    Wk, bk = linear(ks[1], d_model, d_model)
    Wv, bv = linear(ks[2], d_model, d_model)
    Wo, bo = linear(ks[3], d_model, d_model)
    W1, b1 = linear(ks[4], d_model, dim_feedforward)
    W2, b2 = linear(ks[5], dim_feedforward, d_model)
    g1 = 1.0 + 0.1 * jax.random.normal(ks[6], (d_model,), dtype)
    be1 = 0.1 * jax.random.normal(ks[7], (d_model,), dtype)
    g2 = 1.0 + 0.1 * jax.random.normal(ks[8], (d_model,), dtype)
    be2 = 0.1 * jax.random.normal(ks[9], (d_model,), dtype)
    return dict(Wq=Wq, bq=bq, Wk=Wk, bk=bk, Wv=Wv, bv=bv, Wo=Wo, bo=bo,
                W1=W1, b1=b1, W2=W2, b2=b2,
                g1=g1, be1=be1, g2=g2, be2=be2)


def preprocess_params(p, nhead):
    """One-time layout / dtype prep (NOT per call):
       * (out,in)->(in,out) weight transposes, cast to bf16 for the MXU,
       * biases / LN params kept f32 as (1, dim),
       * 1/sqrt(head_dim) attention scale folded into Wq / bq."""
    d_model = p["Wq"].shape[1]
    scale = 1.0 / math.sqrt(d_model // nhead)
    wt = lambda W: jnp.asarray(W.T, dtype=jnp.bfloat16)
    r = lambda v: jnp.asarray(v, jnp.float32).reshape(1, -1)
    return dict(
        wq=jnp.asarray(p["Wq"].T * scale, jnp.bfloat16), bq=r(p["bq"]) * scale,
        wk=wt(p["Wk"]), bk=r(p["bk"]),
        wv=wt(p["Wv"]), bv=r(p["bv"]),
        wo=wt(p["Wo"]), bo=r(p["bo"]),
        w1=wt(p["W1"]), b1=r(p["b1"]),
        w2=wt(p["W2"]), b2=r(p["b2"]),
        g1=r(p["g1"]), be1=r(p["be1"]),
        g2=r(p["g2"]), be2=r(p["be2"]),
    )


def encoder_layer_ref(src, pos, p, nhead):
    """Pure JAX f32 reference mirroring PyTorch forward_post (eval), (B,S,D)."""
    B, S, D = src.shape
    head_dim = D // nhead

    qk = src + pos
    q = qk @ p["Wq"].T + p["bq"]
    k = qk @ p["Wk"].T + p["bk"]
    v = src @ p["Wv"].T + p["bv"]

    def split(t):   # (B, S, D) -> (B, H, S, Dh)
        return jnp.transpose(t.reshape(B, S, nhead, head_dim), (0, 2, 1, 3))

    qh = split(q) * (1.0 / math.sqrt(head_dim))
    kh, vh = split(k), split(v)
    s = jnp.einsum("bhqd,bhkd->bhqk", qh, kh)
    pa = jax.nn.softmax(s, axis=-1)
    o = jnp.einsum("bhqk,bhkd->bhqd", pa, vh)
    o = jnp.transpose(o, (0, 2, 1, 3)).reshape(B, S, D)
    attn = o @ p["Wo"].T + p["bo"]

    x = _layer_norm(src + attn, p["g1"], p["be1"])
    ff = jnp.maximum(x @ p["W1"].T + p["b1"], 0.0) @ p["W2"].T + p["b2"]
    x = _layer_norm(x + ff, p["g2"], p["be2"])
    return x


if __name__ == "__main__":
    key = jax.random.PRNGKey(0)
    d_model, nhead, dim_feedforward = 32, 4, 64
    seq, batch = 10, 2          # seq=10 exercises the pad-to-8 + key-mask path

    key, kx, kpos, kparam = jax.random.split(key, 4)
    src = jax.random.normal(kx, (batch, seq, d_model), jnp.float32)
    pos = jax.random.normal(kpos, (batch, seq, d_model), jnp.float32)

    params = init_encoder_layer_params(kparam, d_model, nhead, dim_feedforward)
    kparams = preprocess_params(params, nhead)   # one-time layout/dtype prep

    out = encoder_layer_forward(src, pos, kparams, nhead)
    out = jax.block_until_ready(out)

    ref = encoder_layer_ref(src, pos, params, nhead)
    assert out.shape == (batch, seq, d_model), out.shape
    max_err = float(jnp.max(jnp.abs(out - ref)))
    # bf16 MXU operands + approx reciprocal => loosened tolerance vs f32 ref.
    assert jnp.allclose(out, ref, atol=5e-2, rtol=5e-2), max_err

    print("KERNEL_OK")
</pallas_src>

<mosaic_0001>
module attributes {stable_mosaic.version = 11 : i64} {
  func.func @_encoder_layer_kernel(%arg0: i32, %arg1: memref<1x16x32xf32, #tpu.memory_space<vmem>>, %arg2: memref<1x16x32xf32, #tpu.memory_space<vmem>>, %arg3: memref<32x32xbf16, #tpu.memory_space<vmem>>, %arg4: memref<1x32xf32, #tpu.memory_space<vmem>>, %arg5: memref<32x32xbf16, #tpu.memory_space<vmem>>, %arg6: memref<1x32xf32, #tpu.memory_space<vmem>>, %arg7: memref<32x32xbf16, #tpu.memory_space<vmem>>, %arg8: memref<1x32xf32, #tpu.memory_space<vmem>>, %arg9: memref<32x32xbf16, #tpu.memory_space<vmem>>, %arg10: memref<1x32xf32, #tpu.memory_space<vmem>>, %arg11: memref<32x64xbf16, #tpu.memory_space<vmem>>, %arg12: memref<1x64xf32, #tpu.memory_space<vmem>>, %arg13: memref<64x32xbf16, #tpu.memory_space<vmem>>, %arg14: memref<1x32xf32, #tpu.memory_space<vmem>>, %arg15: memref<1x32xf32, #tpu.memory_space<vmem>>, %arg16: memref<1x32xf32, #tpu.memory_space<vmem>>, %arg17: memref<1x32xf32, #tpu.memory_space<vmem>>, %arg18: memref<1x32xf32, #tpu.memory_space<vmem>>, %arg19: memref<1x16x32xf32, #tpu.memory_space<vmem>>, %arg20: memref<16x32xbf16, #tpu.memory_space<vmem>>) attributes {dimension_semantics = [#tpu.dimension_semantics<parallel>], iteration_bounds = array<i64: 2>, scalar_prefetch = 0 : i64, scratch_operands = 1 : i64, tpu.core_type = #tpu.core_type<tc>, window_params = [{transform_indices = @transform_0, window_bounds = array<i64: 1, 16, 32>}, {transform_indices = @transform_1, window_bounds = array<i64: 1, 16, 32>}, {pipeline_mode = #tpu.pipeline_mode<synchronous>, transform_indices = @transform_2, window_bounds = array<i64: 32, 32>}, {pipeline_mode = #tpu.pipeline_mode<synchronous>, transform_indices = @transform_3, window_bounds = array<i64: 1, 32>}, {pipeline_mode = #tpu.pipeline_mode<synchronous>, transform_indices = @transform_4, window_bounds = array<i64: 32, 32>}, {pipeline_mode = #tpu.pipeline_mode<synchronous>, transform_indices = @transform_5, window_bounds = array<i64: 1, 32>}, {pipeline_mode = #tpu.pipeline_mode<synchronous>, transform_indices = @transform_6, window_bounds = array<i64: 32, 32>}, {pipeline_mode = #tpu.pipeline_mode<synchronous>, transform_indices = @transform_7, window_bounds = array<i64: 1, 32>}, {pipeline_mode = #tpu.pipeline_mode<synchronous>, transform_indices = @transform_8, window_bounds = array<i64: 32, 32>}, {pipeline_mode = #tpu.pipeline_mode<synchronous>, transform_indices = @transform_9, window_bounds = array<i64: 1, 32>}, {pipeline_mode = #tpu.pipeline_mode<synchronous>, transform_indices = @transform_10, window_bounds = array<i64: 32, 64>}, {pipeline_mode = #tpu.pipeline_mode<synchronous>, transform_indices = @transform_11, window_bounds = array<i64: 1, 64>}, {pipeline_mode = #tpu.pipeline_mode<synchronous>, transform_indices = @transform_12, window_bounds = array<i64: 64, 32>}, {pipeline_mode = #tpu.pipeline_mode<synchronous>, transform_indices = @transform_13, window_bounds = array<i64: 1, 32>}, {pipeline_mode = #tpu.pipeline_mode<synchronous>, transform_indices = @transform_14, window_bounds = array<i64: 1, 32>}, {pipeline_mode = #tpu.pipeline_mode<synchronous>, transform_indices = @transform_15, window_bounds = array<i64: 1, 32>}, {pipeline_mode = #tpu.pipeline_mode<synchronous>, transform_indices = @transform_16, window_bounds = array<i64: 1, 32>}, {pipeline_mode = #tpu.pipeline_mode<synchronous>, transform_indices = @transform_17, window_bounds = array<i64: 1, 32>}, {transform_indices = @transform_18, window_bounds = array<i64: 1, 16, 32>}]} {
    %c0 = arith.constant 0 : index
    %c0_0 = arith.constant 0 : index
    %c0_1 = arith.constant 0 : index
    %0 = vector.load %arg1[%c0, %c0_0, %c0_1] : memref<1x16x32xf32, #tpu.memory_space<vmem>>, vector<1x16x32xf32>
    %1 = vector.shape_cast %0 : vector<1x16x32xf32> to vector<16x32xf32>
    %c0_2 = arith.constant 0 : index
    %c0_3 = arith.constant 0 : index
    %c0_4 = arith.constant 0 : index
    %2 = vector.load %arg2[%c0_2, %c0_3, %c0_4] : memref<1x16x32xf32, #tpu.memory_space<vmem>>, vector<1x16x32xf32>
    %3 = vector.shape_cast %2 : vector<1x16x32xf32> to vector<16x32xf32>
    %4 = arith.addf %1, %3 : vector<16x32xf32>
    %5 = arith.truncf %4 : vector<16x32xf32> to vector<16x32xbf16>
    %6 = arith.truncf %1 : vector<16x32xf32> to vector<16x32xbf16>
    %c0_5 = arith.constant 0 : index
    %c0_6 = arith.constant 0 : index
    %7 = vector.load %arg3[%c0_5, %c0_6] : memref<32x32xbf16, #tpu.memory_space<vmem>>, vector<32x32xbf16>
    %cst = arith.constant dense<0.000000e+00> : vector<16x32xf32>
    %8 = tpu.matmul %5, %7, %cst {dimension_numbers = #tpu.dot_dimension_numbers<[1], [0], [0], [1], [0, 0, 1, 1], [], []>} : vector<16x32xbf16>, vector<32x32xbf16>, vector<16x32xf32> -> vector<16x32xf32>
    %c0_7 = arith.constant 0 : index
    %c0_8 = arith.constant 0 : index
    %9 = vector.load %arg4[%c0_7, %c0_8] : memref<1x32xf32, #tpu.memory_space<vmem>>, vector<1x32xf32>
    %10 = vector.broadcast %9 : vector<1x32xf32> to vector<16x32xf32>
    %11 = arith.addf %8, %10 : vector<16x32xf32>
    %c0_9 = arith.constant 0 : index
    %c0_10 = arith.constant 0 : index
    %12 = vector.load %arg5[%c0_9, %c0_10] : memref<32x32xbf16, #tpu.memory_space<vmem>>, vector<32x32xbf16>
    %cst_11 = arith.constant dense<0.000000e+00> : vector<16x32xf32>
    %13 = tpu.matmul %5, %12, %cst_11 {dimension_numbers = #tpu.dot_dimension_numbers<[1], [0], [0], [1], [0, 0, 1, 1], [], []>} : vector<16x32xbf16>, vector<32x32xbf16>, vector<16x32xf32> -> vector<16x32xf32>
    %c0_12 = arith.constant 0 : index
    %c0_13 = arith.constant 0 : index
    %14 = vector.load %arg6[%c0_12, %c0_13] : memref<1x32xf32, #tpu.memory_space<vmem>>, vector<1x32xf32>
    %15 = vector.broadcast %14 : vector<1x32xf32> to vector<16x32xf32>
    %16 = arith.addf %13, %15 : vector<16x32xf32>
    %c0_14 = arith.constant 0 : index
    %c0_15 = arith.constant 0 : index
    %17 = vector.load %arg7[%c0_14, %c0_15] : memref<32x32xbf16, #tpu.memory_space<vmem>>, vector<32x32xbf16>
    %cst_16 = arith.constant dense<0.000000e+00> : vector<16x32xf32>
    %18 = tpu.matmul %6, %17, %cst_16 {dimension_numbers = #tpu.dot_dimension_numbers<[1], [0], [0], [1], [0, 0, 1, 1], [], []>} : vector<16x32xbf16>, vector<32x32xbf16>, vector<16x32xf32> -> vector<16x32xf32>
    %c0_17 = arith.constant 0 : index
    %c0_18 = arith.constant 0 : index
    %19 = vector.load %arg8[%c0_17, %c0_18] : memref<1x32xf32, #tpu.memory_space<vmem>>, vector<1x32xf32>
    %20 = vector.broadcast %19 : vector<1x32xf32> to vector<16x32xf32>
    %21 = arith.addf %18, %20 : vector<16x32xf32>
    %22 = arith.truncf %11 : vector<16x32xf32> to vector<16x32xbf16>
    %23 = arith.truncf %16 : vector<16x32xf32> to vector<16x32xbf16>
    %24 = arith.truncf %21 : vector<16x32xf32> to vector<16x32xbf16>
    %25 = tpu.iota {dimensions = array<i32: 1>} : vector<16x16xi32>
    %c10_i32 = arith.constant 10 : i32
    %26 = vector.broadcast %c10_i32 : i32 to vector<16x16xi32>
    %27 = arith.cmpi slt, %25, %26 : vector<16x16xi32>
    %28 = vector.extract_strided_slice %22 {offsets = [0, 0], sizes = [16, 8], strides = [1, 1]} : vector<16x32xbf16> to vector<16x8xbf16>
    %29 = vector.extract_strided_slice %23 {offsets = [0, 0], sizes = [16, 8], strides = [1, 1]} : vector<16x32xbf16> to vector<16x8xbf16>
    %30 = vector.extract_strided_slice %24 {offsets = [0, 0], sizes = [16, 8], strides = [1, 1]} : vector<16x32xbf16> to vector<16x8xbf16>
    %cst_19 = arith.constant dense<0.000000e+00> : vector<16x16xf32>
    %31 = tpu.matmul %28, %29, %cst_19 {dimension_numbers = #tpu.dot_dimension_numbers<[1], [1], [0], [0], [0, 0, 1, 0], [], []>} : vector<16x8xbf16>, vector<16x8xbf16>, vector<16x16xf32> -> vector<16x16xf32>
    %cst_20 = arith.constant -1.000000e+30 : f32
    %32 = vector.broadcast %cst_20 : f32 to vector<16x16xf32>
    %33 = arith.select %27, %31, %32 : vector<16x16xi1>, vector<16x16xf32>
    %cst_21 = arith.constant dense<0xFF800000> : vector<16xf32>
    %34 = vector.multi_reduction <maximumf>, %33, %cst_21 [1] : vector<16x16xf32> to vector<16xf32>
    %35 = vector.shape_cast %34 : vector<16xf32> to vector<16x1xf32>
    %36 = vector.broadcast %35 : vector<16x1xf32> to vector<16x16xf32>
    %37 = arith.subf %33, %36 : vector<16x16xf32>
    %38 = math.exp %37 : vector<16x16xf32>
    %cst_22 = arith.constant dense<0.000000e+00> : vector<16xf32>
    %39 = vector.multi_reduction <add>, %38, %cst_22 [1] : vector<16x16xf32> to vector<16xf32>
    %40 = vector.shape_cast %39 : vector<16xf32> to vector<16x1xf32>
    %41 = arith.truncf %38 : vector<16x16xf32> to vector<16x16xbf16>
    %cst_23 = arith.constant dense<0.000000e+00> : vector<16x8xf32>
    %42 = tpu.matmul %41, %30, %cst_23 {dimension_numbers = #tpu.dot_dimension_numbers<[1], [0], [0], [1], [0, 0, 1, 1], [], []>} : vector<16x16xbf16>, vector<16x8xbf16>, vector<16x8xf32> -> vector<16x8xf32>
    %43 = tpu.reciprocal %40 {approx = true} : vector<16x1xf32> -> vector<16x1xf32>
    %44 = vector.broadcast %43 : vector<16x1xf32> to vector<16x8xf32>
    %45 = arith.mulf %42, %44 : vector<16x8xf32>
    %46 = arith.truncf %45 : vector<16x8xf32> to vector<16x8xbf16>
    %c0_24 = arith.constant 0 : index
    %c0_25 = arith.constant 0 : index
    %47 = vector.load %arg20[%c0_24, %c0_25] : memref<16x32xbf16, #tpu.memory_space<vmem>>, vector<16x8xbf16>
    tpu.vector_store %arg20[%c0_24, %c0_25], %46 {strides = array<i32>} : memref<16x32xbf16, #tpu.memory_space<vmem>>, vector<16x8xbf16>,
    %48 = vector.extract_strided_slice %22 {offsets = [0, 8], sizes = [16, 8], strides = [1, 1]} : vector<16x32xbf16> to vector<16x8xbf16>
    %49 = vector.extract_strided_slice %23 {offsets = [0, 8], sizes = [16, 8], strides = [1, 1]} : vector<16x32xbf16> to vector<16x8xbf16>
    %50 = vector.extract_strided_slice %24 {offsets = [0, 8], sizes = [16, 8], strides = [1, 1]} : vector<16x32xbf16> to vector<16x8xbf16>
    %cst_26 = arith.constant dense<0.000000e+00> : vector<16x16xf32>
    %51 = tpu.matmul %48, %49, %cst_26 {dimension_numbers = #tpu.dot_dimension_numbers<[1], [1], [0], [0], [0, 0, 1, 0], [], []>} : vector<16x8xbf16>, vector<16x8xbf16>, vector<16x16xf32> -> vector<16x16xf32>
    %cst_27 = arith.constant -1.000000e+30 : f32
    %52 = vector.broadcast %cst_27 : f32 to vector<16x16xf32>
    %53 = arith.select %27, %51, %52 : vector<16x16xi1>, vector<16x16xf32>
    %cst_28 = arith.constant dense<0xFF800000> : vector<16xf32>
    %54 = vector.multi_reduction <maximumf>, %53, %cst_28 [1] : vector<16x16xf32> to vector<16xf32>
    %55 = vector.shape_cast %54 : vector<16xf32> to vector<16x1xf32>
    %56 = vector.broadcast %55 : vector<16x1xf32> to vector<16x16xf32>
    %57 = arith.subf %53, %56 : vector<16x16xf32>
    %58 = math.exp %57 : vector<16x16xf32>
    %cst_29 = arith.constant dense<0.000000e+00> : vector<16xf32>
    %59 = vector.multi_reduction <add>, %58, %cst_29 [1] : vector<16x16xf32> to vector<16xf32>
    %60 = vector.shape_cast %59 : vector<16xf32> to vector<16x1xf32>
    %61 = arith.truncf %58 : vector<16x16xf32> to vector<16x16xbf16>
    %cst_30 = arith.constant dense<0.000000e+00> : vector<16x8xf32>
    %62 = tpu.matmul %61, %50, %cst_30 {dimension_numbers = #tpu.dot_dimension_numbers<[1], [0], [0], [1], [0, 0, 1, 1], [], []>} : vector<16x16xbf16>, vector<16x8xbf16>, vector<16x8xf32> -> vector<16x8xf32>
    %63 = tpu.reciprocal %60 {approx = true} : vector<16x1xf32> -> vector<16x1xf32>
    %64 = vector.broadcast %63 : vector<16x1xf32> to vector<16x8xf32>
    %65 = arith.mulf %62, %64 : vector<16x8xf32>
    %66 = arith.truncf %65 : vector<16x8xf32> to vector<16x8xbf16>
    %c0_31 = arith.constant 0 : index
    %c8 = arith.constant 8 : index
    %67 = vector.load %arg20[%c0_31, %c8] : memref<16x32xbf16, #tpu.memory_space<vmem>>, vector<16x8xbf16>
    tpu.vector_store %arg20[%c0_31, %c8], %66 {strides = array<i32>} : memref<16x32xbf16, #tpu.memory_space<vmem>>, vector<16x8xbf16>,
    %68 = vector.extract_strided_slice %22 {offsets = [0, 16], sizes = [16, 8], strides = [1, 1]} : vector<16x32xbf16> to vector<16x8xbf16>
    %69 = vector.extract_strided_slice %23 {offsets = [0, 16], sizes = [16, 8], strides = [1, 1]} : vector<16x32xbf16> to vector<16x8xbf16>
    %70 = vector.extract_strided_slice %24 {offsets = [0, 16], sizes = [16, 8], strides = [1, 1]} : vector<16x32xbf16> to vector<16x8xbf16>
    %cst_32 = arith.constant dense<0.000000e+00> : vector<16x16xf32>
    %71 = tpu.matmul %68, %69, %cst_32 {dimension_numbers = #tpu.dot_dimension_numbers<[1], [1], [0], [0], [0, 0, 1, 0], [], []>} : vector<16x8xbf16>, vector<16x8xbf16>, vector<16x16xf32> -> vector<16x16xf32>
    %cst_33 = arith.constant -1.000000e+30 : f32
    %72 = vector.broadcast %cst_33 : f32 to vector<16x16xf32>
    %73 = arith.select %27, %71, %72 : vector<16x16xi1>, vector<16x16xf32>
    %cst_34 = arith.constant dense<0xFF800000> : vector<16xf32>
    %74 = vector.multi_reduction <maximumf>, %73, %cst_34 [1] : vector<16x16xf32> to vector<16xf32>
    %75 = vector.shape_cast %74 : vector<16xf32> to vector<16x1xf32>
    %76 = vector.broadcast %75 : vector<16x1xf32> to vector<16x16xf32>
    %77 = arith.subf %73, %76 : vector<16x16xf32>
    %78 = math.exp %77 : vector<16x16xf32>
    %cst_35 = arith.constant dense<0.000000e+00> : vector<16xf32>
    %79 = vector.multi_reduction <add>, %78, %cst_35 [1] : vector<16x16xf32> to vector<16xf32>
    %80 = vector.shape_cast %79 : vector<16xf32> to vector<16x1xf32>
    %81 = arith.truncf %78 : vector<16x16xf32> to vector<16x16xbf16>
    %cst_36 = arith.constant dense<0.000000e+00> : vector<16x8xf32>
    %82 = tpu.matmul %81, %70, %cst_36 {dimension_numbers = #tpu.dot_dimension_numbers<[1], [0], [0], [1], [0, 0, 1, 1], [], []>} : vector<16x16xbf16>, vector<16x8xbf16>, vector<16x8xf32> -> vector<16x8xf32>
    %83 = tpu.reciprocal %80 {approx = true} : vector<16x1xf32> -> vector<16x1xf32>
    %84 = vector.broadcast %83 : vector<16x1xf32> to vector<16x8xf32>
    %85 = arith.mulf %82, %84 : vector<16x8xf32>
    %86 = arith.truncf %85 : vector<16x8xf32> to vector<16x8xbf16>
    %c0_37 = arith.constant 0 : index
    %c16 = arith.constant 16 : index
    %87 = vector.load %arg20[%c0_37, %c16] : memref<16x32xbf16, #tpu.memory_space<vmem>>, vector<16x8xbf16>
    tpu.vector_store %arg20[%c0_37, %c16], %86 {strides = array<i32>} : memref<16x32xbf16, #tpu.memory_space<vmem>>, vector<16x8xbf16>,
    %88 = vector.extract_strided_slice %22 {offsets = [0, 24], sizes = [16, 8], strides = [1, 1]} : vector<16x32xbf16> to vector<16x8xbf16>
    %89 = vector.extract_strided_slice %23 {offsets = [0, 24], sizes = [16, 8], strides = [1, 1]} : vector<16x32xbf16> to vector<16x8xbf16>
    %90 = vector.extract_strided_slice %24 {offsets = [0, 24], sizes = [16, 8], strides = [1, 1]} : vector<16x32xbf16> to vector<16x8xbf16>
    %cst_38 = arith.constant dense<0.000000e+00> : vector<16x16xf32>
    %91 = tpu.matmul %88, %89, %cst_38 {dimension_numbers = #tpu.dot_dimension_numbers<[1], [1], [0], [0], [0, 0, 1, 0], [], []>} : vector<16x8xbf16>, vector<16x8xbf16>, vector<16x16xf32> -> vector<16x16xf32>
    %cst_39 = arith.constant -1.000000e+30 : f32
    %92 = vector.broadcast %cst_39 : f32 to vector<16x16xf32>
    %93 = arith.select %27, %91, %92 : vector<16x16xi1>, vector<16x16xf32>
    %cst_40 = arith.constant dense<0xFF800000> : vector<16xf32>
    %94 = vector.multi_reduction <maximumf>, %93, %cst_40 [1] : vector<16x16xf32> to vector<16xf32>
    %95 = vector.shape_cast %94 : vector<16xf32> to vector<16x1xf32>
    %96 = vector.broadcast %95 : vector<16x1xf32> to vector<16x16xf32>
    %97 = arith.subf %93, %96 : vector<16x16xf32>
    %98 = math.exp %97 : vector<16x16xf32>
    %cst_41 = arith.constant dense<0.000000e+00> : vector<16xf32>
    %99 = vector.multi_reduction <add>, %98, %cst_41 [1] : vector<16x16xf32> to vector<16xf32>
    %100 = vector.shape_cast %99 : vector<16xf32> to vector<16x1xf32>
    %101 = arith.truncf %98 : vector<16x16xf32> to vector<16x16xbf16>
    %cst_42 = arith.constant dense<0.000000e+00> : vector<16x8xf32>
    %102 = tpu.matmul %101, %90, %cst_42 {dimension_numbers = #tpu.dot_dimension_numbers<[1], [0], [0], [1], [0, 0, 1, 1], [], []>} : vector<16x16xbf16>, vector<16x8xbf16>, vector<16x8xf32> -> vector<16x8xf32>
    %103 = tpu.reciprocal %100 {approx = true} : vector<16x1xf32> -> vector<16x1xf32>
    %104 = vector.broadcast %103 : vector<16x1xf32> to vector<16x8xf32>
    %105 = arith.mulf %102, %104 : vector<16x8xf32>
    %106 = arith.truncf %105 : vector<16x8xf32> to vector<16x8xbf16>
    %c0_43 = arith.constant 0 : index
    %c24 = arith.constant 24 : index
    %107 = vector.load %arg20[%c0_43, %c24] : memref<16x32xbf16, #tpu.memory_space<vmem>>, vector<16x8xbf16>
    tpu.vector_store %arg20[%c0_43, %c24], %106 {strides = array<i32>} : memref<16x32xbf16, #tpu.memory_space<vmem>>, vector<16x8xbf16>,
    %c0_44 = arith.constant 0 : index
    %c0_45 = arith.constant 0 : index
    %108 = vector.load %arg20[%c0_44, %c0_45] : memref<16x32xbf16, #tpu.memory_space<vmem>>, vector<16x32xbf16>
    %c0_46 = arith.constant 0 : index
    %c0_47 = arith.constant 0 : index
    %109 = vector.load %arg9[%c0_46, %c0_47] : memref<32x32xbf16, #tpu.memory_space<vmem>>, vector<32x32xbf16>
    %cst_48 = arith.constant dense<0.000000e+00> : vector<16x32xf32>
    %110 = tpu.matmul %108, %109, %cst_48 {dimension_numbers = #tpu.dot_dimension_numbers<[1], [0], [0], [1], [0, 0, 1, 1], [], []>} : vector<16x32xbf16>, vector<32x32xbf16>, vector<16x32xf32> -> vector<16x32xf32>
    %c0_49 = arith.constant 0 : index
    %c0_50 = arith.constant 0 : index
    %111 = vector.load %arg10[%c0_49, %c0_50] : memref<1x32xf32, #tpu.memory_space<vmem>>, vector<1x32xf32>
    %112 = vector.broadcast %111 : vector<1x32xf32> to vector<16x32xf32>
    %113 = arith.addf %110, %112 : vector<16x32xf32>
    %114 = arith.addf %1, %113 : vector<16x32xf32>
    %c0_51 = arith.constant 0 : index
    %c0_52 = arith.constant 0 : index
    %115 = vector.load %arg15[%c0_51, %c0_52] : memref<1x32xf32, #tpu.memory_space<vmem>>, vector<1x32xf32>
    %c0_53 = arith.constant 0 : index
    %c0_54 = arith.constant 0 : index
    %116 = vector.load %arg16[%c0_53, %c0_54] : memref<1x32xf32, #tpu.memory_space<vmem>>, vector<1x32xf32>
    %cst_55 = arith.constant dense<0.000000e+00> : vector<16xf32>
    %117 = vector.multi_reduction <add>, %114, %cst_55 [1] : vector<16x32xf32> to vector<16xf32>
    %118 = vector.shape_cast %117 : vector<16xf32> to vector<16x1xf32>
    %cst_56 = arith.constant 3.200000e+01 : f32
    %119 = vector.broadcast %cst_56 : f32 to vector<16x1xf32>
    %120 = arith.divf %118, %119 : vector<16x1xf32>
    %121 = vector.broadcast %120 : vector<16x1xf32> to vector<16x32xf32>
    %122 = arith.subf %114, %121 : vector<16x32xf32>
    %123 = arith.mulf %122, %122 : vector<16x32xf32>
    %cst_57 = arith.constant dense<0.000000e+00> : vector<16xf32>
    %124 = vector.multi_reduction <add>, %123, %cst_57 [1] : vector<16x32xf32> to vector<16xf32>
    %125 = vector.shape_cast %124 : vector<16xf32> to vector<16x1xf32>
    %cst_58 = arith.constant 3.200000e+01 : f32
    %126 = vector.broadcast %cst_58 : f32 to vector<16x1xf32>
    %127 = arith.divf %125, %126 : vector<16x1xf32>
    %cst_59 = arith.constant 9.99999974E-6 : f32
    %128 = vector.broadcast %cst_59 : f32 to vector<16x1xf32>
    %129 = arith.addf %127, %128 : vector<16x1xf32>
    %130 = math.rsqrt %129 : vector<16x1xf32>
    %131 = vector.broadcast %130 : vector<16x1xf32> to vector<16x32xf32>
    %132 = arith.mulf %122, %131 : vector<16x32xf32>
    %133 = vector.broadcast %115 : vector<1x32xf32> to vector<16x32xf32>
    %134 = arith.mulf %132, %133 : vector<16x32xf32>
    %135 = vector.broadcast %116 : vector<1x32xf32> to vector<16x32xf32>
    %136 = arith.addf %134, %135 : vector<16x32xf32>
    %137 = arith.truncf %136 : vector<16x32xf32> to vector<16x32xbf16>
    %cst_60 = arith.constant 0.000000e+00 : f32
    %138 = vector.broadcast %cst_60 : f32 to vector<16x32xf32>
    %c0_61 = arith.constant 0 : index
    %c0_62 = arith.constant 0 : index
    %139 = vector.load %arg11[%c0_61, %c0_62] : memref<32x64xbf16, #tpu.memory_space<vmem>>, vector<32x64xbf16>
    %cst_63 = arith.constant dense<0.000000e+00> : vector<16x64xf32>
    %140 = tpu.matmul %137, %139, %cst_63 {dimension_numbers = #tpu.dot_dimension_numbers<[1], [0], [0], [1], [0, 0, 1, 1], [], []>} : vector<16x32xbf16>, vector<32x64xbf16>, vector<16x64xf32> -> vector<16x64xf32>
    %c0_64 = arith.constant 0 : index
    %c0_65 = arith.constant 0 : index
    %141 = vector.load %arg12[%c0_64, %c0_65] : memref<1x64xf32, #tpu.memory_space<vmem>>, vector<1x64xf32>
    %142 = vector.broadcast %141 : vector<1x64xf32> to vector<16x64xf32>
    %143 = arith.addf %140, %142 : vector<16x64xf32>
    %cst_66 = arith.constant 0.000000e+00 : f32
    %144 = vector.broadcast %cst_66 : f32 to vector<16x64xf32>
    %145 = arith.maximumf %143, %144 : vector<16x64xf32>
    %146 = arith.truncf %145 : vector<16x64xf32> to vector<16x64xbf16>
    %c0_67 = arith.constant 0 : index
    %c0_68 = arith.constant 0 : index
    %147 = vector.load %arg13[%c0_67, %c0_68] : memref<64x32xbf16, #tpu.memory_space<vmem>>, vector<64x32xbf16>
    %cst_69 = arith.constant dense<0.000000e+00> : vector<16x32xf32>
    %148 = tpu.matmul %146, %147, %cst_69 {dimension_numbers = #tpu.dot_dimension_numbers<[1], [0], [0], [1], [0, 0, 1, 1], [], []>} : vector<16x64xbf16>, vector<64x32xbf16>, vector<16x32xf32> -> vector<16x32xf32>
    %149 = arith.addf %138, %148 : vector<16x32xf32>
    %c0_70 = arith.constant 0 : index
    %c0_71 = arith.constant 0 : index
    %150 = vector.load %arg14[%c0_70, %c0_71] : memref<1x32xf32, #tpu.memory_space<vmem>>, vector<1x32xf32>
    %151 = vector.broadcast %150 : vector<1x32xf32> to vector<16x32xf32>
    %152 = arith.addf %149, %151 : vector<16x32xf32>
    %153 = arith.addf %136, %152 : vector<16x32xf32>
    %c0_72 = arith.constant 0 : index
    %c0_73 = arith.constant 0 : index
    %154 = vector.load %arg17[%c0_72, %c0_73] : memref<1x32xf32, #tpu.memory_space<vmem>>, vector<1x32xf32>
    %c0_74 = arith.constant 0 : index
    %c0_75 = arith.constant 0 : index
    %155 = vector.load %arg18[%c0_74, %c0_75] : memref<1x32xf32, #tpu.memory_space<vmem>>, vector<1x32xf32>
    %cst_76 = arith.constant dense<0.000000e+00> : vector<16xf32>
    %156 = vector.multi_reduction <add>, %153, %cst_76 [1] : vector<16x32xf32> to vector<16xf32>
    %157 = vector.shape_cast %156 : vector<16xf32> to vector<16x1xf32>
    %cst_77 = arith.constant 3.200000e+01 : f32
    %158 = vector.broadcast %cst_77 : f32 to vector<16x1xf32>
    %159 = arith.divf %157, %158 : vector<16x1xf32>
    %160 = vector.broadcast %159 : vector<16x1xf32> to vector<16x32xf32>
    %161 = arith.subf %153, %160 : vector<16x32xf32>
    %162 = arith.mulf %161, %161 : vector<16x32xf32>
    %cst_78 = arith.constant dense<0.000000e+00> : vector<16xf32>
    %163 = vector.multi_reduction <add>, %162, %cst_78 [1] : vector<16x32xf32> to vector<16xf32>
    %164 = vector.shape_cast %163 : vector<16xf32> to vector<16x1xf32>
    %cst_79 = arith.constant 3.200000e+01 : f32
    %165 = vector.broadcast %cst_79 : f32 to vector<16x1xf32>
    %166 = arith.divf %164, %165 : vector<16x1xf32>
    %cst_80 = arith.constant 9.99999974E-6 : f32
    %167 = vector.broadcast %cst_80 : f32 to vector<16x1xf32>
    %168 = arith.addf %166, %167 : vector<16x1xf32>
    %169 = math.rsqrt %168 : vector<16x1xf32>
    %170 = vector.broadcast %169 : vector<16x1xf32> to vector<16x32xf32>
    %171 = arith.mulf %161, %170 : vector<16x32xf32>
    %172 = vector.broadcast %154 : vector<1x32xf32> to vector<16x32xf32>
    %173 = arith.mulf %171, %172 : vector<16x32xf32>
    %174 = vector.broadcast %155 : vector<1x32xf32> to vector<16x32xf32>
    %175 = arith.addf %173, %174 : vector<16x32xf32>
    %c0_81 = arith.constant 0 : index
    %c0_82 = arith.constant 0 : index
    %c0_83 = arith.constant 0 : index
    %176 = vector.load %arg19[%c0_81, %c0_82, %c0_83] : memref<1x16x32xf32, #tpu.memory_space<vmem>>, vector<1x16x32xf32>
    %177 = vector.shape_cast %176 : vector<1x16x32xf32> to vector<16x32xf32>
    %178 = vector.shape_cast %175 : vector<16x32xf32> to vector<1x16x32xf32>
    tpu.vector_store %arg19[%c0_81, %c0_82, %c0_83], %178 {strides = array<i32>} : memref<1x16x32xf32, #tpu.memory_space<vmem>>, vector<1x16x32xf32>,
    return
  }
  func.func @transform_0(%arg0: i32) -> (i32, i32, i32) {
    %c0_i32 = arith.constant 0 : i32
    %c0_i32_0 = arith.constant 0 : i32
    %c0_i32_1 = arith.constant 0 : i32
    return %arg0, %c0_i32, %c0_i32_0 : i32, i32, i32
  }
  func.func @transform_1(%arg0: i32) -> (i32, i32, i32) {
    %c0_i32 = arith.constant 0 : i32
    %c0_i32_0 = arith.constant 0 : i32
    %c0_i32_1 = arith.constant 0 : i32
    return %arg0, %c0_i32, %c0_i32_0 : i32, i32, i32
  }
  func.func @transform_2(%arg0: i32) -> (i32, i32) {
    %c0_i32 = arith.constant 0 : i32
    %c0_i32_0 = arith.constant 0 : i32
    %c0_i32_1 = arith.constant 0 : i32
    return %c0_i32, %c0_i32_0 : i32, i32
  }
  func.func @transform_3(%arg0: i32) -> (i32, i32) {
    %c0_i32 = arith.constant 0 : i32
    %c0_i32_0 = arith.constant 0 : i32
    %c0_i32_1 = arith.constant 0 : i32
    return %c0_i32, %c0_i32_0 : i32, i32
  }
  func.func @transform_4(%arg0: i32) -> (i32, i32) {
    %c0_i32 = arith.constant 0 : i32
    %c0_i32_0 = arith.constant 0 : i32
    %c0_i32_1 = arith.constant 0 : i32
    return %c0_i32, %c0_i32_0 : i32, i32
  }
  func.func @transform_5(%arg0: i32) -> (i32, i32) {
    %c0_i32 = arith.constant 0 : i32
    %c0_i32_0 = arith.constant 0 : i32
    %c0_i32_1 = arith.constant 0 : i32
    return %c0_i32, %c0_i32_0 : i32, i32
  }
  func.func @transform_6(%arg0: i32) -> (i32, i32) {
    %c0_i32 = arith.constant 0 : i32
    %c0_i32_0 = arith.constant 0 : i32
    %c0_i32_1 = arith.constant 0 : i32
    return %c0_i32, %c0_i32_0 : i32, i32
  }
  func.func @transform_7(%arg0: i32) -> (i32, i32) {
    %c0_i32 = arith.constant 0 : i32
    %c0_i32_0 = arith.constant 0 : i32
    %c0_i32_1 = arith.constant 0 : i32
    return %c0_i32, %c0_i32_0 : i32, i32
  }
  func.func @transform_8(%arg0: i32) -> (i32, i32) {
    %c0_i32 = arith.constant 0 : i32
    %c0_i32_0 = arith.constant 0 : i32
    %c0_i32_1 = arith.constant 0 : i32
    return %c0_i32, %c0_i32_0 : i32, i32
  }
  func.func @transform_9(%arg0: i32) -> (i32, i32) {
    %c0_i32 = arith.constant 0 : i32
    %c0_i32_0 = arith.constant 0 : i32
    %c0_i32_1 = arith.constant 0 : i32
    return %c0_i32, %c0_i32_0 : i32, i32
  }
  func.func @transform_10(%arg0: i32) -> (i32, i32) {
    %c0_i32 = arith.constant 0 : i32
    %c0_i32_0 = arith.constant 0 : i32
    %c0_i32_1 = arith.constant 0 : i32
    return %c0_i32, %c0_i32_0 : i32, i32
  }
  func.func @transform_11(%arg0: i32) -> (i32, i32) {
    %c0_i32 = arith.constant 0 : i32
    %c0_i32_0 = arith.constant 0 : i32
    %c0_i32_1 = arith.constant 0 : i32
    return %c0_i32, %c0_i32_0 : i32, i32
  }
  func.func @transform_12(%arg0: i32) -> (i32, i32) {
    %c0_i32 = arith.constant 0 : i32
    %c0_i32_0 = arith.constant 0 : i32
    %c0_i32_1 = arith.constant 0 : i32
    return %c0_i32, %c0_i32_0 : i32, i32
  }
  func.func @transform_13(%arg0: i32) -> (i32, i32) {
    %c0_i32 = arith.constant 0 : i32
    %c0_i32_0 = arith.constant 0 : i32
    %c0_i32_1 = arith.constant 0 : i32
    return %c0_i32, %c0_i32_0 : i32, i32
  }
  func.func @transform_14(%arg0: i32) -> (i32, i32) {
    %c0_i32 = arith.constant 0 : i32
    %c0_i32_0 = arith.constant 0 : i32
    %c0_i32_1 = arith.constant 0 : i32
    return %c0_i32, %c0_i32_0 : i32, i32
  }
  func.func @transform_15(%arg0: i32) -> (i32, i32) {
    %c0_i32 = arith.constant 0 : i32
    %c0_i32_0 = arith.constant 0 : i32
    %c0_i32_1 = arith.constant 0 : i32
    return %c0_i32, %c0_i32_0 : i32, i32
  }
  func.func @transform_16(%arg0: i32) -> (i32, i32) {
    %c0_i32 = arith.constant 0 : i32
    %c0_i32_0 = arith.constant 0 : i32
    %c0_i32_1 = arith.constant 0 : i32
    return %c0_i32, %c0_i32_0 : i32, i32
  }
  func.func @transform_17(%arg0: i32) -> (i32, i32) {
    %c0_i32 = arith.constant 0 : i32
    %c0_i32_0 = arith.constant 0 : i32
    %c0_i32_1 = arith.constant 0 : i32
    return %c0_i32, %c0_i32_0 : i32, i32
  }
  func.func @transform_18(%arg0: i32) -> (i32, i32, i32) {
    %c0_i32 = arith.constant 0 : i32
    %c0_i32_0 = arith.constant 0 : i32
    %c0_i32_1 = arith.constant 0 : i32
    return %arg0, %c0_i32, %c0_i32_0 : i32, i32, i32
  }
}

</mosaic_0001>

<llo_original>
// kernel: encoder_layer_forward.1
$region0: #{encoder_layer_forward.1}
  #allocation0 [shape = 'u32[]', space=smem, size = 0x4, offset = 0x4, fixed_abs, tag = 'smem constant byte address 0x4 - core index']
  #allocation1 [shape = 'u32[144,128]{1,0:T(1,128)}', space=vmem, size = 0x12000, scoped, tag = 'internal scratch']
  #allocation2 [shape = 'bf16[16,32]{1,0:T(16,128)(2,1)}', space=vmem, size = 0x1000, scoped, tag = 'scratch operand']
  %s0 = inlined_call_operand.vmem [shape: f32[2,16,32], index: 0, kind: input, shape index: {}]
  %s1 = inlined_call_operand.vmem [shape: f32[2,16,32], index: 1, kind: input, shape index: {}]
  %s2 = inlined_call_operand.vmem [shape: bf16[32,32], index: 2, kind: input, shape index: {}]
  %s3 = inlined_call_operand.vmem [shape: f32[1,32], index: 3, kind: input, shape index: {}]
  %s4 = inlined_call_operand.vmem [shape: bf16[32,32], index: 4, kind: input, shape index: {}]
  %s5 = inlined_call_operand.vmem [shape: f32[1,32], index: 5, kind: input, shape index: {}]
  %s6 = inlined_call_operand.vmem [shape: bf16[32,32], index: 6, kind: input, shape index: {}]
  %s7 = inlined_call_operand.vmem [shape: f32[1,32], index: 7, kind: input, shape index: {}]
  %s8 = inlined_call_operand.vmem [shape: bf16[32,32], index: 8, kind: input, shape index: {}]
  %s9 = inlined_call_operand.vmem [shape: f32[1,32], index: 9, kind: input, shape index: {}]
  %s10 = inlined_call_operand.vmem [shape: bf16[32,64], index: 10, kind: input, shape index: {}]
  %s11 = inlined_call_operand.vmem [shape: f32[1,64], index: 11, kind: input, shape index: {}]
  %s12 = inlined_call_operand.vmem [shape: bf16[64,32], index: 12, kind: input, shape index: {}]
  %s13 = inlined_call_operand.vmem [shape: f32[1,32], index: 13, kind: input, shape index: {}]
  %s14 = inlined_call_operand.vmem [shape: f32[1,32], index: 14, kind: input, shape index: {}]
  %s15 = inlined_call_operand.vmem [shape: f32[1,32], index: 15, kind: input, shape index: {}]
  %s16 = inlined_call_operand.vmem [shape: f32[1,32], index: 16, kind: input, shape index: {}]
  %s17 = inlined_call_operand.vmem [shape: f32[1,32], index: 17, kind: input, shape index: {}]
  %s18 = inlined_call_operand.vmem [shape: f32[2,16,32], index: 18, kind: output, shape index: {}]
  %s19 = sld [smem:[#allocation0]]
  $region105: #{encoder_layer_forward.1} parent=0
    _
  %s21 = ssub.s32 1, %s19
  %s22 = scalar_select 0, %s21, %s19
  loop: start=0, step=1, limit=4
  $region2: #{encoder_layer_forward.1} parent=0 // loop_pre_header
    _
  $region3: #{encoder_layer_forward.1} parent=0 // loop_header
    %s24 = sphi 0, %s28
    %p25 = scmp.ge.s32.totalorder %s24, 4
    %s34 = sphi 0, %s36
    %s37 = sphi 0, %s34
    %s38 = sphi 0, %s37
    %s54 = sphi 0, %s38
    %s60 = sphi 0, %s62
    %s63 = sphi 0, %s60
    %s64 = sphi 0, %s63
    %s80 = sphi 0, %s64
    %s84 = sphi 0, %s84
    %s86 = sphi 0, %s84
    %s87 = sphi 0, %s86
    %s101 = sphi 0, %s87
    %s105 = sphi 0, %s105
    %s107 = sphi 0, %s105
    %s108 = sphi 0, %s107
    %s122 = sphi 0, %s108
    %s126 = sphi 0, %s126
    %s128 = sphi 0, %s126
    %s129 = sphi 0, %s128
    %s143 = sphi 0, %s129
    %s147 = sphi 0, %s147
    %s149 = sphi 0, %s147
    %s150 = sphi 0, %s149
    %s164 = sphi 0, %s150
    %s168 = sphi 0, %s168
    %s170 = sphi 0, %s168
    %s171 = sphi 0, %s170
    %s185 = sphi 0, %s171
    %s189 = sphi 0, %s189
    %s191 = sphi 0, %s189
    %s192 = sphi 0, %s191
    %s206 = sphi 0, %s192
    %s210 = sphi 0, %s210
    %s212 = sphi 0, %s210
    %s213 = sphi 0, %s212
    %s227 = sphi 0, %s213
    %s231 = sphi 0, %s231
    %s233 = sphi 0, %s231
    %s234 = sphi 0, %s233
    %s248 = sphi 0, %s234
    %s252 = sphi 0, %s252
    %s254 = sphi 0, %s252
    %s255 = sphi 0, %s254
    %s269 = sphi 0, %s255
    %s273 = sphi 0, %s273
    %s275 = sphi 0, %s273
    %s276 = sphi 0, %s275
    %s290 = sphi 0, %s276
    %s294 = sphi 0, %s294
    %s296 = sphi 0, %s294
    %s297 = sphi 0, %s296
    %s311 = sphi 0, %s297
    %s315 = sphi 0, %s315
    %s317 = sphi 0, %s315
    %s318 = sphi 0, %s317
    %s332 = sphi 0, %s318
    %s336 = sphi 0, %s336
    %s338 = sphi 0, %s336
    %s339 = sphi 0, %s338
    %s353 = sphi 0, %s339
    %s357 = sphi 0, %s357
    %s359 = sphi 0, %s357
    %s360 = sphi 0, %s359
    %s374 = sphi 0, %s360
    %s378 = sphi 0, %s378
    %s380 = sphi 0, %s378
    %s381 = sphi 0, %s380
    %s395 = sphi 0, %s381
    %s399 = sphi 0, %s399
    %s401 = sphi 0, %s399
    %s402 = sphi 0, %s401
    %s416 = sphi 0, %s402
    %s422 = sphi 0, %s424
    %s425 = sphi 0, %s422
    %s426 = sphi 0, %s425
    %s442 = sphi 0, %s426
  $region4: #{encoder_layer_forward.1} parent=0 // loop_header_branch
    %27 = sbr.rel (%p25) target = $region8
  $region5: #{encoder_layer_forward.1} parent=0 // loop_body
    %s29 = ssub.s32 %s24, 1
    %s30 = ssub.s32 %s24, 2
    %s31 = sadd.s32 %s24, 1
    %s32 = ssub.s32 %s24, %s31
    %p33 = scmp.eq.s32.totalorder %s32, 0
    %s35 = sadd.s32 %s34, 1
    %s36 = scalar_select %p33, %s34, %s35
    %p39 = pneg %p33
    %p40 = scmp.eq.s32.totalorder %s24, 1
    %p41 = por %p39, %p40
    %p42 = scmp.ne.s32.totalorder %s34, %s37
    %p43 = scmp.eq.s32.totalorder %s24, 0
    %p44 = por %p42, %p43
    %p45 = scmp.ne.s32.totalorder %s34, %s37
    %p46 = scmp.eq.s32.totalorder %s29, 1
    %p47 = por %p45, %p46
    %p48 = scmp.ne.s32.totalorder %s37, %s38
    %p49 = scmp.eq.s32.totalorder %s29, 0
    %p50 = por %p48, %p49
    %p51 = scmp.ne.s32.totalorder %s37, %s38
    %p52 = scmp.eq.s32.totalorder %s30, 1
    %p53 = por %p51, %p52
    %p55 = scmp.ne.s32.totalorder %s38, %s54
    %p56 = scmp.eq.s32.totalorder %s30, 0
    %p57 = por %p55, %p56
    %s58 = ssub.s32 %s24, %s31
    %p59 = scmp.eq.s32.totalorder %s58, 0
    %s61 = sadd.s32 %s60, 1
    %s62 = scalar_select %p59, %s60, %s61
    %p65 = pneg %p59
    %p66 = scmp.eq.s32.totalorder %s24, 1
    %p67 = por %p65, %p66
    %p68 = scmp.ne.s32.totalorder %s60, %s63
    %p69 = scmp.eq.s32.totalorder %s24, 0
    %p70 = por %p68, %p69
    %p71 = scmp.ne.s32.totalorder %s60, %s63
    %p72 = scmp.eq.s32.totalorder %s29, 1
    %p73 = por %p71, %p72
    %p74 = scmp.ne.s32.totalorder %s63, %s64
    %p75 = scmp.eq.s32.totalorder %s29, 0
    %p76 = por %p74, %p75
    %p77 = scmp.ne.s32.totalorder %s63, %s64
    %p78 = scmp.eq.s32.totalorder %s30, 1
    %p79 = por %p77, %p78
    %p81 = scmp.ne.s32.totalorder %s64, %s80
    %p82 = scmp.eq.s32.totalorder %s30, 0
    %p83 = por %p81, %p82
    %s85 = sadd.s32 %s84, 1
    %p88 = scmp.eq.s32.totalorder %s24, 1
    %p89 = scmp.ne.s32.totalorder %s84, %s86
    %p90 = scmp.eq.s32.totalorder %s24, 0
    %p91 = por %p89, %p90
    %p92 = scmp.ne.s32.totalorder %s84, %s86
    %p93 = scmp.eq.s32.totalorder %s29, 1
    %p94 = por %p92, %p93
    %p95 = scmp.ne.s32.totalorder %s86, %s87
    %p96 = scmp.eq.s32.totalorder %s29, 0
    %p97 = por %p95, %p96
    %p98 = scmp.ne.s32.totalorder %s86, %s87
    %p99 = scmp.eq.s32.totalorder %s30, 1
    %p100 = por %p98, %p99
    %p102 = scmp.ne.s32.totalorder %s87, %s101
    %p103 = scmp.eq.s32.totalorder %s30, 0
    %p104 = por %p102, %p103
    %s106 = sadd.s32 %s105, 1
    %p109 = scmp.eq.s32.totalorder %s24, 1
    %p110 = scmp.ne.s32.totalorder %s105, %s107
    %p111 = scmp.eq.s32.totalorder %s24, 0
    %p112 = por %p110, %p111
    %p113 = scmp.ne.s32.totalorder %s105, %s107
    %p114 = scmp.eq.s32.totalorder %s29, 1
    %p115 = por %p113, %p114
    %p116 = scmp.ne.s32.totalorder %s107, %s108
    %p117 = scmp.eq.s32.totalorder %s29, 0
    %p118 = por %p116, %p117
    %p119 = scmp.ne.s32.totalorder %s107, %s108
    %p120 = scmp.eq.s32.totalorder %s30, 1
    %p121 = por %p119, %p120
    %p123 = scmp.ne.s32.totalorder %s108, %s122
    %p124 = scmp.eq.s32.totalorder %s30, 0
    %p125 = por %p123, %p124
    %s127 = sadd.s32 %s126, 1
    %p130 = scmp.eq.s32.totalorder %s24, 1
    %p131 = scmp.ne.s32.totalorder %s126, %s128
    %p132 = scmp.eq.s32.totalorder %s24, 0
    %p133 = por %p131, %p132
    %p134 = scmp.ne.s32.totalorder %s126, %s128
    %p135 = scmp.eq.s32.totalorder %s29, 1
    %p136 = por %p134, %p135
    %p137 = scmp.ne.s32.totalorder %s128, %s129
    %p138 = scmp.eq.s32.totalorder %s29, 0
    %p139 = por %p137, %p138
    %p140 = scmp.ne.s32.totalorder %s128, %s129
    %p141 = scmp.eq.s32.totalorder %s30, 1
    %p142 = por %p140, %p141
    %p144 = scmp.ne.s32.totalorder %s129, %s143
    %p145 = scmp.eq.s32.totalorder %s30, 0
    %p146 = por %p144, %p145
    %s148 = sadd.s32 %s147, 1
    %p151 = scmp.eq.s32.totalorder %s24, 1
    %p152 = scmp.ne.s32.totalorder %s147, %s149
    %p153 = scmp.eq.s32.totalorder %s24, 0
    %p154 = por %p152, %p153
    %p155 = scmp.ne.s32.totalorder %s147, %s149
    %p156 = scmp.eq.s32.totalorder %s29, 1
    %p157 = por %p155, %p156
    %p158 = scmp.ne.s32.totalorder %s149, %s150
    %p159 = scmp.eq.s32.totalorder %s29, 0
    %p160 = por %p158, %p159
    %p161 = scmp.ne.s32.totalorder %s149, %s150
    %p162 = scmp.eq.s32.totalorder %s30, 1
    %p163 = por %p161, %p162
    %p165 = scmp.ne.s32.totalorder %s150, %s164
    %p166 = scmp.eq.s32.totalorder %s30, 0
    %p167 = por %p165, %p166
    %s169 = sadd.s32 %s168, 1
    %p172 = scmp.eq.s32.totalorder %s24, 1
    %p173 = scmp.ne.s32.totalorder %s168, %s170
    %p174 = scmp.eq.s32.totalorder %s24, 0
    %p175 = por %p173, %p174
    %p176 = scmp.ne.s32.totalorder %s168, %s170
    %p177 = scmp.eq.s32.totalorder %s29, 1
    %p178 = por %p176, %p177
    %p179 = scmp.ne.s32.totalorder %s170, %s171
    %p180 = scmp.eq.s32.totalorder %s29, 0
    %p181 = por %p179, %p180
    %p182 = scmp.ne.s32.totalorder %s170, %s171
    %p183 = scmp.eq.s32.totalorder %s30, 1
    %p184 = por %p182, %p183
    %p186 = scmp.ne.s32.totalorder %s171, %s185
    %p187 = scmp.eq.s32.totalorder %s30, 0
    %p188 = por %p186, %p187
    %s190 = sadd.s32 %s189, 1
    %p193 = scmp.eq.s32.totalorder %s24, 1
    %p194 = scmp.ne.s32.totalorder %s189, %s191
    %p195 = scmp.eq.s32.totalorder %s24, 0
    %p196 = por %p194, %p195
    %p197 = scmp.ne.s32.totalorder %s189, %s191
    %p198 = scmp.eq.s32.totalorder %s29, 1
    %p199 = por %p197, %p198
    %p200 = scmp.ne.s32.totalorder %s191, %s192
    %p201 = scmp.eq.s32.totalorder %s29, 0
    %p202 = por %p200, %p201
    %p203 = scmp.ne.s32.totalorder %s191, %s192
    %p204 = scmp.eq.s32.totalorder %s30, 1
    %p205 = por %p203, %p204
    %p207 = scmp.ne.s32.totalorder %s192, %s206
    %p208 = scmp.eq.s32.totalorder %s30, 0
    %p209 = por %p207, %p208
    %s211 = sadd.s32 %s210, 1
    %p214 = scmp.eq.s32.totalorder %s24, 1
    %p215 = scmp.ne.s32.totalorder %s210, %s212
    %p216 = scmp.eq.s32.totalorder %s24, 0
    %p217 = por %p215, %p216
    %p218 = scmp.ne.s32.totalorder %s210, %s212
    %p219 = scmp.eq.s32.totalorder %s29, 1
    %p220 = por %p218, %p219
    %p221 = scmp.ne.s32.totalorder %s212, %s213
    %p222 = scmp.eq.s32.totalorder %s29, 0
    %p223 = por %p221, %p222
    %p224 = scmp.ne.s32.totalorder %s212, %s213
    %p225 = scmp.eq.s32.totalorder %s30, 1
    %p226 = por %p224, %p225
    %p228 = scmp.ne.s32.totalorder %s213, %s227
    %p229 = scmp.eq.s32.totalorder %s30, 0
    %p230 = por %p228, %p229
    %s232 = sadd.s32 %s231, 1
    %p235 = scmp.eq.s32.totalorder %s24, 1
    %p236 = scmp.ne.s32.totalorder %s231, %s233
    %p237 = scmp.eq.s32.totalorder %s24, 0
    %p238 = por %p236, %p237
    %p239 = scmp.ne.s32.totalorder %s231, %s233
    %p240 = scmp.eq.s32.totalorder %s29, 1
    %p241 = por %p239, %p240
    %p242 = scmp.ne.s32.totalorder %s233, %s234
    %p243 = scmp.eq.s32.totalorder %s29, 0
    %p244 = por %p242, %p243
    %p245 = scmp.ne.s32.totalorder %s233, %s234
    %p246 = scmp.eq.s32.totalorder %s30, 1
    %p247 = por %p245, %p246
    %p249 = scmp.ne.s32.totalorder %s234, %s248
    %p250 = scmp.eq.s32.totalorder %s30, 0
    %p251 = por %p249, %p250
    %s253 = sadd.s32 %s252, 1
    %p256 = scmp.eq.s32.totalorder %s24, 1
    %p257 = scmp.ne.s32.totalorder %s252, %s254
    %p258 = scmp.eq.s32.totalorder %s24, 0
    %p259 = por %p257, %p258
    %p260 = scmp.ne.s32.totalorder %s252, %s254
    %p261 = scmp.eq.s32.totalorder %s29, 1
    %p262 = por %p260, %p261
    %p263 = scmp.ne.s32.totalorder %s254, %s255
    %p264 = scmp.eq.s32.totalorder %s29, 0
    %p265 = por %p263, %p264
    %p266 = scmp.ne.s32.totalorder %s254, %s255
    %p267 = scmp.eq.s32.totalorder %s30, 1
    %p268 = por %p266, %p267
    %p270 = scmp.ne.s32.totalorder %s255, %s269
    %p271 = scmp.eq.s32.totalorder %s30, 0
    %p272 = por %p270, %p271
    %s274 = sadd.s32 %s273, 1
    %p277 = scmp.eq.s32.totalorder %s24, 1
    %p278 = scmp.ne.s32.totalorder %s273, %s275
    %p279 = scmp.eq.s32.totalorder %s24, 0
    %p280 = por %p278, %p279
    %p281 = scmp.ne.s32.totalorder %s273, %s275
    %p282 = scmp.eq.s32.totalorder %s29, 1
    %p283 = por %p281, %p282
    %p284 = scmp.ne.s32.totalorder %s275, %s276
    %p285 = scmp.eq.s32.totalorder %s29, 0
    %p286 = por %p284, %p285
    %p287 = scmp.ne.s32.totalorder %s275, %s276
    %p288 = scmp.eq.s32.totalorder %s30, 1
    %p289 = por %p287, %p288
    %p291 = scmp.ne.s32.totalorder %s276, %s290
    %p292 = scmp.eq.s32.totalorder %s30, 0
    %p293 = por %p291, %p292
    %s295 = sadd.s32 %s294, 1
    %p298 = scmp.eq.s32.totalorder %s24, 1
    %p299 = scmp.ne.s32.totalorder %s294, %s296
    %p300 = scmp.eq.s32.totalorder %s24, 0
    %p301 = por %p299, %p300
    %p302 = scmp.ne.s32.totalorder %s294, %s296
    %p303 = scmp.eq.s32.totalorder %s29, 1
    %p304 = por %p302, %p303
    %p305 = scmp.ne.s32.totalorder %s296, %s297
    %p306 = scmp.eq.s32.totalorder %s29, 0
    %p307 = por %p305, %p306
    %p308 = scmp.ne.s32.totalorder %s296, %s297
    %p309 = scmp.eq.s32.totalorder %s30, 1
    %p310 = por %p308, %p309
    %p312 = scmp.ne.s32.totalorder %s297, %s311
    %p313 = scmp.eq.s32.totalorder %s30, 0
    %p314 = por %p312, %p313
    %s316 = sadd.s32 %s315, 1
    %p319 = scmp.eq.s32.totalorder %s24, 1
    %p320 = scmp.ne.s32.totalorder %s315, %s317
    %p321 = scmp.eq.s32.totalorder %s24, 0
    %p322 = por %p320, %p321
    %p323 = scmp.ne.s32.totalorder %s315, %s317
    %p324 = scmp.eq.s32.totalorder %s29, 1
    %p325 = por %p323, %p324
    %p326 = scmp.ne.s32.totalorder %s317, %s318
    %p327 = scmp.eq.s32.totalorder %s29, 0
    %p328 = por %p326, %p327
    %p329 = scmp.ne.s32.totalorder %s317, %s318
    %p330 = scmp.eq.s32.totalorder %s30, 1
    %p331 = por %p329, %p330
    %p333 = scmp.ne.s32.totalorder %s318, %s332
    %p334 = scmp.eq.s32.totalorder %s30, 0
    %p335 = por %p333, %p334
    %s337 = sadd.s32 %s336, 1
    %p340 = scmp.eq.s32.totalorder %s24, 1
    %p341 = scmp.ne.s32.totalorder %s336, %s338
    %p342 = scmp.eq.s32.totalorder %s24, 0
    %p343 = por %p341, %p342
    %p344 = scmp.ne.s32.totalorder %s336, %s338
    %p345 = scmp.eq.s32.totalorder %s29, 1
    %p346 = por %p344, %p345
    %p347 = scmp.ne.s32.totalorder %s338, %s339
    %p348 = scmp.eq.s32.totalorder %s29, 0
    %p349 = por %p347, %p348
    %p350 = scmp.ne.s32.totalorder %s338, %s339
    %p351 = scmp.eq.s32.totalorder %s30, 1
    %p352 = por %p350, %p351
    %p354 = scmp.ne.s32.totalorder %s339, %s353
    %p355 = scmp.eq.s32.totalorder %s30, 0
    %p356 = por %p354, %p355
    %s358 = sadd.s32 %s357, 1
    %p361 = scmp.eq.s32.totalorder %s24, 1
    %p362 = scmp.ne.s32.totalorder %s357, %s359
    %p363 = scmp.eq.s32.totalorder %s24, 0
    %p364 = por %p362, %p363
    %p365 = scmp.ne.s32.totalorder %s357, %s359
    %p366 = scmp.eq.s32.totalorder %s29, 1
    %p367 = por %p365, %p366
    %p368 = scmp.ne.s32.totalorder %s359, %s360
    %p369 = scmp.eq.s32.totalorder %s29, 0
    %p370 = por %p368, %p369
    %p371 = scmp.ne.s32.totalorder %s359, %s360
    %p372 = scmp.eq.s32.totalorder %s30, 1
    %p373 = por %p371, %p372
    %p375 = scmp.ne.s32.totalorder %s360, %s374
    %p376 = scmp.eq.s32.totalorder %s30, 0
    %p377 = por %p375, %p376
    %s379 = sadd.s32 %s378, 1
    %p382 = scmp.eq.s32.totalorder %s24, 1
    %p383 = scmp.ne.s32.totalorder %s378, %s380
    %p384 = scmp.eq.s32.totalorder %s24, 0
    %p385 = por %p383, %p384
    %p386 = scmp.ne.s32.totalorder %s378, %s380
    %p387 = scmp.eq.s32.totalorder %s29, 1
    %p388 = por %p386, %p387
    %p389 = scmp.ne.s32.totalorder %s380, %s381
    %p390 = scmp.eq.s32.totalorder %s29, 0
    %p391 = por %p389, %p390
    %p392 = scmp.ne.s32.totalorder %s380, %s381
    %p393 = scmp.eq.s32.totalorder %s30, 1
    %p394 = por %p392, %p393
    %p396 = scmp.ne.s32.totalorder %s381, %s395
    %p397 = scmp.eq.s32.totalorder %s30, 0
    %p398 = por %p396, %p397
    %s400 = sadd.s32 %s399, 1
    %p403 = scmp.eq.s32.totalorder %s24, 1
    %p404 = scmp.ne.s32.totalorder %s399, %s401
    %p405 = scmp.eq.s32.totalorder %s24, 0
    %p406 = por %p404, %p405
    %p407 = scmp.ne.s32.totalorder %s399, %s401
    %p408 = scmp.eq.s32.totalorder %s29, 1
    %p409 = por %p407, %p408
    %p410 = scmp.ne.s32.totalorder %s401, %s402
    %p411 = scmp.eq.s32.totalorder %s29, 0
    %p412 = por %p410, %p411
    %p413 = scmp.ne.s32.totalorder %s401, %s402
    %p414 = scmp.eq.s32.totalorder %s30, 1
    %p415 = por %p413, %p414
    %p417 = scmp.ne.s32.totalorder %s402, %s416
    %p418 = scmp.eq.s32.totalorder %s30, 0
    %p419 = por %p417, %p418
    %s420 = ssub.s32 %s24, %s31
    %p421 = scmp.eq.s32.totalorder %s420, 0
    %s423 = sadd.s32 %s422, 1
    %s424 = scalar_select %p421, %s422, %s423
    %p427 = pneg %p421
    %p428 = scmp.eq.s32.totalorder %s24, 1
    %p429 = por %p427, %p428
    %p430 = scmp.ne.s32.totalorder %s422, %s425
    %p431 = scmp.eq.s32.totalorder %s24, 0
    %p432 = por %p430, %p431
    %p433 = scmp.ne.s32.totalorder %s422, %s425
    %p434 = scmp.eq.s32.totalorder %s29, 1
    %p435 = por %p433, %p434
    %p436 = scmp.ne.s32.totalorder %s425, %s426
    %p437 = scmp.eq.s32.totalorder %s29, 0
    %p438 = por %p436, %p437
    %p439 = scmp.ne.s32.totalorder %s425, %s426
    %p440 = scmp.eq.s32.totalorder %s30, 1
    %p441 = por %p439, %p440
    %p443 = scmp.ne.s32.totalorder %s426, %s442
    %p444 = scmp.eq.s32.totalorder %s30, 0
    %p445 = por %p443, %p444
    %p446 = scmp.le.s32.totalorder 1, %s24
    %p447 = scmp.lt.s32.totalorder %s24, 3
    %p448 = pnand %p446, %p447
    %p449 = pneg %p448
    // Predicated region
    $region9: #{encoder_layer_forward.1} parent=5 // pred_check
      _
    $region10: #{encoder_layer_forward.1} parent=5 // pred_check_branch
      %451 = sbr.rel (%p448) target = $region12
    $region11: #{encoder_layer_forward.1} parent=5 // pred_region
      %s452 = ssub.s32 %s24, 1
      // Predicated region
      $region13: #{encoder_layer_forward.1} parent=11 // pred_check
        %p453 = pneg %p97
      $region14: #{encoder_layer_forward.1} parent=11 // pred_check_branch
        %455 = sbr.rel (%p453) target = $region16
      $region15: #{encoder_layer_forward.1} parent=11 // pred_region
        _
      $region16: #{encoder_layer_forward.1} parent=11 // pred_fallthru
        _
      // Predicated region
      $region17: #{encoder_layer_forward.1} parent=11 // pred_check
        %p456 = pneg %p118
      $region18: #{encoder_layer_forward.1} parent=11 // pred_check_branch
        %458 = sbr.rel (%p456) target = $region20
      $region19: #{encoder_layer_forward.1} parent=11 // pred_region
        _
      $region20: #{encoder_layer_forward.1} parent=11 // pred_fallthru
        _
      // Predicated region
      $region21: #{encoder_layer_forward.1} parent=11 // pred_check
        %p459 = pneg %p139
      $region22: #{encoder_layer_forward.1} parent=11 // pred_check_branch
        %461 = sbr.rel (%p459) target = $region24
      $region23: #{encoder_layer_forward.1} parent=11 // pred_region
        _
      $region24: #{encoder_layer_forward.1} parent=11 // pred_fallthru
        _
      // Predicated region
      $region25: #{encoder_layer_forward.1} parent=11 // pred_check
        %p462 = pneg %p160
      $region26: #{encoder_layer_forward.1} parent=11 // pred_check_branch
        %464 = sbr.rel (%p462) target = $region28
      $region27: #{encoder_layer_forward.1} parent=11 // pred_region
        _
      $region28: #{encoder_layer_forward.1} parent=11 // pred_fallthru
        _
      // Predicated region
      $region29: #{encoder_layer_forward.1} parent=11 // pred_check
        %p465 = pneg %p181
      $region30: #{encoder_layer_forward.1} parent=11 // pred_check_branch
        %467 = sbr.rel (%p465) target = $region32
      $region31: #{encoder_layer_forward.1} parent=11 // pred_region
        _
      $region32: #{encoder_layer_forward.1} parent=11 // pred_fallthru
        _
      // Predicated region
      $region33: #{encoder_layer_forward.1} parent=11 // pred_check
        %p468 = pneg %p202
      $region34: #{encoder_layer_forward.1} parent=11 // pred_check_branch
        %470 = sbr.rel (%p468) target = $region36
      $region35: #{encoder_layer_forward.1} parent=11 // pred_region
        _
      $region36: #{encoder_layer_forward.1} parent=11 // pred_fallthru
        _
      // Predicated region
      $region37: #{encoder_layer_forward.1} parent=11 // pred_check
        %p471 = pneg %p223
      $region38: #{encoder_layer_forward.1} parent=11 // pred_check_branch
        %473 = sbr.rel (%p471) target = $region40
      $region39: #{encoder_layer_forward.1} parent=11 // pred_region
        _
      $region40: #{encoder_layer_forward.1} parent=11 // pred_fallthru
        _
      // Predicated region
      $region41: #{encoder_layer_forward.1} parent=11 // pred_check
        %p474 = pneg %p244
      $region42: #{encoder_layer_forward.1} parent=11 // pred_check_branch
        %476 = sbr.rel (%p474) target = $region44
      $region43: #{encoder_layer_forward.1} parent=11 // pred_region
        _
      $region44: #{encoder_layer_forward.1} parent=11 // pred_fallthru
        _
      // Predicated region
      $region45: #{encoder_layer_forward.1} parent=11 // pred_check
        %p477 = pneg %p265
      $region46: #{encoder_layer_forward.1} parent=11 // pred_check_branch
        %479 = sbr.rel (%p477) target = $region48
      $region47: #{encoder_layer_forward.1} parent=11 // pred_region
        _
      $region48: #{encoder_layer_forward.1} parent=11 // pred_fallthru
        _
      // Predicated region
      $region49: #{encoder_layer_forward.1} parent=11 // pred_check
        %p480 = pneg %p286
      $region50: #{encoder_layer_forward.1} parent=11 // pred_check_branch
        %482 = sbr.rel (%p480) target = $region52
      $region51: #{encoder_layer_forward.1} parent=11 // pred_region
        _
      $region52: #{encoder_layer_forward.1} parent=11 // pred_fallthru
        _
      // Predicated region
      $region53: #{encoder_layer_forward.1} parent=11 // pred_check
        %p483 = pneg %p307
      $region54: #{encoder_layer_forward.1} parent=11 // pred_check_branch
        %485 = sbr.rel (%p483) target = $region56
      $region55: #{encoder_layer_forward.1} parent=11 // pred_region
        _
      $region56: #{encoder_layer_forward.1} parent=11 // pred_fallthru
        _
      // Predicated region
      $region57: #{encoder_layer_forward.1} parent=11 // pred_check
        %p486 = pneg %p328
      $region58: #{encoder_layer_forward.1} parent=11 // pred_check_branch
        %488 = sbr.rel (%p486) target = $region60
      $region59: #{encoder_layer_forward.1} parent=11 // pred_region
        _
      $region60: #{encoder_layer_forward.1} parent=11 // pred_fallthru
        _
      // Predicated region
      $region61: #{encoder_layer_forward.1} parent=11 // pred_check
        %p489 = pneg %p349
      $region62: #{encoder_layer_forward.1} parent=11 // pred_check_branch
        %491 = sbr.rel (%p489) target = $region64
      $region63: #{encoder_layer_forward.1} parent=11 // pred_region
        _
      $region64: #{encoder_layer_forward.1} parent=11 // pred_fallthru
        _
      // Predicated region
      $region65: #{encoder_layer_forward.1} parent=11 // pred_check
        %p492 = pneg %p370
      $region66: #{encoder_layer_forward.1} parent=11 // pred_check_branch
        %494 = sbr.rel (%p492) target = $region68
      $region67: #{encoder_layer_forward.1} parent=11 // pred_region
        _
      $region68: #{encoder_layer_forward.1} parent=11 // pred_fallthru
        _
      // Predicated region
      $region69: #{encoder_layer_forward.1} parent=11 // pred_check
        %p495 = pneg %p391
      $region70: #{encoder_layer_forward.1} parent=11 // pred_check_branch
        %497 = sbr.rel (%p495) target = $region72
      $region71: #{encoder_layer_forward.1} parent=11 // pred_region
        _
      $region72: #{encoder_layer_forward.1} parent=11 // pred_fallthru
        _
      // Predicated region
      $region73: #{encoder_layer_forward.1} parent=11 // pred_check
        %p498 = pneg %p412
      $region74: #{encoder_layer_forward.1} parent=11 // pred_check_branch
        %500 = sbr.rel (%p498) target = $region76
      $region75: #{encoder_layer_forward.1} parent=11 // pred_region
        _
      $region76: #{encoder_layer_forward.1} parent=11 // pred_fallthru
        _
    $region12: #{encoder_layer_forward.1} parent=5 // pred_fallthru
      _
    %p501 = scmp.lt.s32.totalorder %s24, 2
    // Predicated region
    $region77: #{encoder_layer_forward.1} parent=5 // pred_check
      %p502 = pneg %p501
    $region78: #{encoder_layer_forward.1} parent=5 // pred_check_branch
      %504 = sbr.rel (%p502) target = $region80
    $region79: #{encoder_layer_forward.1} parent=5 // pred_region
      // Predicated region
      $region81: #{encoder_layer_forward.1} parent=79 // pred_check
        %p505 = pneg %p44
      $region82: #{encoder_layer_forward.1} parent=79 // pred_check_branch
        %507 = sbr.rel (%p505) target = $region84
      $region83: #{encoder_layer_forward.1} parent=79 // pred_region
        %p508 = scmp.lt.s32.totalorder %s24, 1
        %s509 = scalar_select %p508, %s24, 1
        %s510 = smul.addr %s509, 2
        %s511 = smul.addr %s510, 8
        %s512 = scalar_lea.vmem %s0, %s511
      $region84: #{encoder_layer_forward.1} parent=79 // pred_fallthru
        _
      // Predicated region
      $region85: #{encoder_layer_forward.1} parent=79 // pred_check
        %p513 = pneg %p70
      $region86: #{encoder_layer_forward.1} parent=79 // pred_check_branch
        %515 = sbr.rel (%p513) target = $region88
      $region87: #{encoder_layer_forward.1} parent=79 // pred_region
        %p516 = scmp.lt.s32.totalorder %s24, 1
        %s517 = scalar_select %p516, %s24, 1
        %s518 = smul.addr %s517, 2
        %s519 = smul.addr %s518, 8
        %s520 = scalar_lea.vmem %s1, %s519
      $region88: #{encoder_layer_forward.1} parent=79 // pred_fallthru
        _
    $region80: #{encoder_layer_forward.1} parent=5 // pred_fallthru
      _
    %p521 = scmp.le.s32.totalorder 1, %s24
    %p522 = scmp.lt.s32.totalorder %s24, 3
    %p523 = pnand %p521, %p522
    %p524 = pneg %p523
    // Predicated region
    $region89: #{encoder_layer_forward.1} parent=5 // pred_check
      _
    $region90: #{encoder_layer_forward.1} parent=5 // pred_check_branch
      %526 = sbr.rel (%p523) target = $region92
    $region91: #{encoder_layer_forward.1} parent=5 // pred_region
      %s527 = ssub.s32 %s24, 1
      %p528 = scmp.lt.s32.totalorder %s29, 1
      %s529 = scalar_select %p528, %s29, 1
      %s530 = smul.addr %s529, 2
      %s531 = smul.addr %s530, 8
      %s532 = scalar_lea.vmem %s0, %s531
      %p533 = pneg %p50
      %p534 = pneg %p47
      %p535 = scmp.lt.s32.totalorder %s29, 1
      %s536 = scalar_select %p535, %s29, 1
      %s537 = smul.addr %s536, 2
      %s538 = smul.addr %s537, 8
      %s539 = scalar_lea.vmem %s1, %s538
      %p540 = pneg %p76
      %p541 = pneg %p73
      %p542 = pneg %p97
      %p543 = pneg %p94
      %p544 = pneg %p118
      %p545 = pneg %p115
      %p546 = pneg %p139
      %p547 = pneg %p136
      %p548 = pneg %p160
      %p549 = pneg %p157
      %p550 = pneg %p181
      %p551 = pneg %p178
      %p552 = pneg %p202
      %p553 = pneg %p199
      %p554 = pneg %p223
      %p555 = pneg %p220
      %p556 = pneg %p244
      %p557 = pneg %p241
      %p558 = pneg %p265
      %p559 = pneg %p262
      %p560 = pneg %p286
      %p561 = pneg %p283
      %p562 = pneg %p307
      %p563 = pneg %p304
      %p564 = pneg %p328
      %p565 = pneg %p325
      %p566 = pneg %p349
      %p567 = pneg %p346
      %p568 = pneg %p370
      %p569 = pneg %p367
      %p570 = pneg %p391
      %p571 = pneg %p388
      %p572 = pneg %p412
      %p573 = pneg %p409
      %p574 = pneg %p438
      %p575 = pneg %p435
      %p576 = scmp.lt.s32.totalorder %s29, 1
      %s577 = scalar_select %p576, %s29, 1
      %s578 = smul.addr %s577, 2
      %s579 = smul.addr %s578, 8
      %s580 = scalar_lea.vmem %s18, %s579
      %p581 = scmp.lt.s32.totalorder %s29, 1
      %s582 = scalar_select %p581, %s29, 1
      %s583 = smul.addr %s582, 2
      %s584 = smul.addr %s583, 8
      %s585 = scalar_lea.vmem %s0, %s584
      %p586 = scmp.lt.s32.totalorder %s29, 1
      %s587 = scalar_select %p586, %s29, 1
      %s588 = smul.addr %s587, 2
      %s589 = smul.addr %s588, 8
      %s590 = scalar_lea.vmem %s1, %s589
      %p591 = scmp.lt.s32.totalorder %s29, 1
      %s592 = scalar_select %p591, %s29, 1
      %s593 = smul.addr %s592, 2
      %s594 = smul.addr %s593, 8
      %s595 = scalar_lea.vmem %s18, %s594
      %v597 = vld [vmem:[%s585] sm:$0xff]
      %v598 = vld [vmem:[%s585 + $0x8] sm:$0xff]
      %v599 = vld [vmem:[%s590] sm:$0xff]
      %v600 = vld [vmem:[%s590 + $0x8] sm:$0xff]
      %v601 = vadd.f32 %v597, %v599
      %v602 = vadd.f32 %v598, %v600
      %v603 = vpack.c.bf16 %v602, %v601
      %v604 = vpack.c.bf16 %v598, %v597
      %v605 = vld [vmem:[%s2] sm:$0xf]
      %v606 = vld [vmem:[%s2 + $0x4] sm:$0xf]
      %v607 = vld [vmem:[%s2 + $0x8] sm:$0xf]
      %v608 = vld [vmem:[%s2 + $0xc] sm:$0xf]
      %v609 = vld [vmem:[%s3] sm:$0x1]
      %v611 = vlaneseq
      %v612 = vshrl.u32 %v611, 7
      %v613 = vsub.s32 0, %v612
      %v614 = vrot.slane %v609, %v613
      %v620 = vunpack.c.l.b16 %v605
      %v621 = vunpack.c.l.b16 %v606
      %v622 = vunpack.c.l.b16 %v607
      %v623 = vunpack.c.l.b16 %v608
      %v624 = vpack.c.b16 %v621, %v620
      %v625 = vpack.c.b16 %v623, %v622
      %vm628 = vcmask 261120
      %v630 = vsel %vm628, %v603, 0
      %632 = vmatprep.subr.bf16.mxu0 0
      %633 = vmatpush1.bf16.msra.mxu0 %v624
      %634 = vmatprep.subr.bf16.mxu0 0
      %635 = vmatpush1.bf16.msra.mxu0 %v625
      %636 = vmatprep.subr.bf16.mxu0 0
      %637 = vmatpush1.bf16.msra.mxu0 0
      %638 = vmatprep.subr.bf16.mxu0 0
      %639 = vmatpush1.bf16.msra.mxu0 0
      %640 = vmatprep.subr.bf16.mxu0 0
      %641 = vmatpush1.bf16.msra.mxu0 0
      %642 = vmatprep.subr.bf16.mxu0 0
      %643 = vmatpush1.bf16.msra.mxu0 0
      %644 = vmatprep.subr.bf16.mxu0 0
      %645 = vmatpush1.bf16.msra.mxu0 0
      %646 = vmatprep.subr.bf16.mxu0 0
      %647 = vmatpush1.bf16.msra.mxu0 0
      %648 = vmatprep.subr.bf16.mxu0 0
      %649 = vmatpush1.bf16.msra.mxu0 0
      %650 = vmatprep.subr.bf16.mxu0 0
      %651 = vmatpush1.bf16.msra.mxu0 0
      %652 = vmatprep.subr.bf16.mxu0 0
      %653 = vmatpush1.bf16.msra.mxu0 0
      %654 = vmatprep.subr.bf16.mxu0 0
      %655 = vmatpush1.bf16.msra.mxu0 0
      %656 = vmatprep.subr.bf16.mxu0 0
      %657 = vmatpush1.bf16.msra.mxu0 0
      %658 = vmatprep.subr.bf16.mxu0 0
      %659 = vmatpush1.bf16.msra.mxu0 0
      %660 = vmatprep.subr.bf16.mxu0 0
      %661 = vmatpush1.bf16.msra.mxu0 0
      %662 = vmatprep.subr.bf16.mxu0 0
      %663 = vmatpush1.bf16.msra.mxu0 0
      %664 = vmatprep.mubr.bf16.mxu0 0
      %665 = vmatmul.mubr.bf16.gmra.mrb[0].mxu0 %v630
      %v666 = vpop.f32.mrb[0].mxu0
      %v667 = vadd.f32 %v614, %v666
      %v668 = vpop.f32.mrb[0].mxu0
      %v669 = vpop.f32.mrb[0].mxu0
      %v670 = vadd.f32 %v614, %v669
      %v671 = vpop.f32.mrb[0].mxu0
      %672 = vdwg.mxu0
      %v673 = vld [vmem:[%s4] sm:$0xf]
      %v674 = vld [vmem:[%s4 + $0x4] sm:$0xf]
      %v675 = vld [vmem:[%s4 + $0x8] sm:$0xf]
      %v676 = vld [vmem:[%s4 + $0xc] sm:$0xf]
      %v677 = vld [vmem:[%s5] sm:$0x1]
      %v679 = vlaneseq
      %v680 = vshrl.u32 %v679, 7
      %v681 = vsub.s32 0, %v680
      %v682 = vrot.slane %v677, %v681
      %v688 = vunpack.c.l.b16 %v673
      %v689 = vunpack.c.l.b16 %v674
      %v690 = vunpack.c.l.b16 %v675
      %v691 = vunpack.c.l.b16 %v676
      %v692 = vpack.c.b16 %v689, %v688
      %v693 = vpack.c.b16 %v691, %v690
      %696 = vmatprep.subr.bf16.mxu0 0
      %697 = vmatpush1.bf16.msra.mxu0 %v692
      %698 = vmatprep.subr.bf16.mxu0 0
      %699 = vmatpush1.bf16.msra.mxu0 %v693
      %700 = vmatprep.subr.bf16.mxu0 0
      %701 = vmatpush1.bf16.msra.mxu0 0
      %702 = vmatprep.subr.bf16.mxu0 0
      %703 = vmatpush1.bf16.msra.mxu0 0
      %704 = vmatprep.subr.bf16.mxu0 0
      %705 = vmatpush1.bf16.msra.mxu0 0
      %706 = vmatprep.subr.bf16.mxu0 0
      %707 = vmatpush1.bf16.msra.mxu0 0
      %708 = vmatprep.subr.bf16.mxu0 0
      %709 = vmatpush1.bf16.msra.mxu0 0
      %710 = vmatprep.subr.bf16.mxu0 0
      %711 = vmatpush1.bf16.msra.mxu0 0
      %712 = vmatprep.subr.bf16.mxu0 0
      %713 = vmatpush1.bf16.msra.mxu0 0
      %714 = vmatprep.subr.bf16.mxu0 0
      %715 = vmatpush1.bf16.msra.mxu0 0
      %716 = vmatprep.subr.bf16.mxu0 0
      %717 = vmatpush1.bf16.msra.mxu0 0
      %718 = vmatprep.subr.bf16.mxu0 0
      %719 = vmatpush1.bf16.msra.mxu0 0
      %720 = vmatprep.subr.bf16.mxu0 0
      %721 = vmatpush1.bf16.msra.mxu0 0
      %722 = vmatprep.subr.bf16.mxu0 0
      %723 = vmatpush1.bf16.msra.mxu0 0
      %724 = vmatprep.subr.bf16.mxu0 0
      %725 = vmatpush1.bf16.msra.mxu0 0
      %726 = vmatprep.subr.bf16.mxu0 0
      %727 = vmatpush1.bf16.msra.mxu0 0
      %728 = vmatprep.mubr.bf16.mxu0 0
      %729 = vmatmul.mubr.bf16.gmra.mrb[0].mxu0 %v630
      %v730 = vpop.f32.mrb[0].mxu0
      %v731 = vadd.f32 %v682, %v730
      %v732 = vpop.f32.mrb[0].mxu0
      %v733 = vpop.f32.mrb[0].mxu0
      %v734 = vadd.f32 %v682, %v733
      %v735 = vpop.f32.mrb[0].mxu0
      %736 = vdwg.mxu0
      %v737 = vld [vmem:[%s6] sm:$0xf]
      %v738 = vld [vmem:[%s6 + $0x4] sm:$0xf]
      %v739 = vld [vmem:[%s6 + $0x8] sm:$0xf]
      %v740 = vld [vmem:[%s6 + $0xc] sm:$0xf]
      %v741 = vld [vmem:[%s7] sm:$0x1]
      %v743 = vlaneseq
      %v744 = vshrl.u32 %v743, 7
      %v745 = vsub.s32 0, %v744
      %v746 = vrot.slane %v741, %v745
      %v752 = vunpack.c.l.b16 %v737
      %v753 = vunpack.c.l.b16 %v738
      %v754 = vunpack.c.l.b16 %v739
      %v755 = vunpack.c.l.b16 %v740
      %v756 = vpack.c.b16 %v753, %v752
      %v757 = vpack.c.b16 %v755, %v754
      %v761 = vsel %vm628, %v604, 0
      %763 = vmatprep.subr.bf16.mxu0 0
      %764 = vmatpush1.bf16.msra.mxu0 %v756
      %765 = vmatprep.subr.bf16.mxu0 0
      %766 = vmatpush1.bf16.msra.mxu0 %v757
      %767 = vmatprep.subr.bf16.mxu0 0
      %768 = vmatpush1.bf16.msra.mxu0 0
      %769 = vmatprep.subr.bf16.mxu0 0
      %770 = vmatpush1.bf16.msra.mxu0 0
      %771 = vmatprep.subr.bf16.mxu0 0
      %772 = vmatpush1.bf16.msra.mxu0 0
      %773 = vmatprep.subr.bf16.mxu0 0
      %774 = vmatpush1.bf16.msra.mxu0 0
      %775 = vmatprep.subr.bf16.mxu0 0
      %776 = vmatpush1.bf16.msra.mxu0 0
      %777 = vmatprep.subr.bf16.mxu0 0
      %778 = vmatpush1.bf16.msra.mxu0 0
      %779 = vmatprep.subr.bf16.mxu0 0
      %780 = vmatpush1.bf16.msra.mxu0 0
      %781 = vmatprep.subr.bf16.mxu0 0
      %782 = vmatpush1.bf16.msra.mxu0 0
      %783 = vmatprep.subr.bf16.mxu0 0
      %784 = vmatpush1.bf16.msra.mxu0 0
      %785 = vmatprep.subr.bf16.mxu0 0
      %786 = vmatpush1.bf16.msra.mxu0 0
      %787 = vmatprep.subr.bf16.mxu0 0
      %788 = vmatpush1.bf16.msra.mxu0 0
      %789 = vmatprep.subr.bf16.mxu0 0
      %790 = vmatpush1.bf16.msra.mxu0 0
      %791 = vmatprep.subr.bf16.mxu0 0
      %792 = vmatpush1.bf16.msra.mxu0 0
      %793 = vmatprep.subr.bf16.mxu0 0
      %794 = vmatpush1.bf16.msra.mxu0 0
      %795 = vmatprep.mubr.bf16.mxu0 0
      %796 = vmatmul.mubr.bf16.gmra.mrb[0].mxu0 %v761
      %v797 = vpop.f32.mrb[0].mxu0
      %v798 = vadd.f32 %v746, %v797
      %v799 = vpop.f32.mrb[0].mxu0
      %v800 = vpop.f32.mrb[0].mxu0
      %v801 = vadd.f32 %v746, %v800
      %v802 = vpop.f32.mrb[0].mxu0
      %803 = vdwg.mxu0
      %v804 = vpack.c.bf16 %v670, %v667
      %v805 = vpack.c.bf16 %v734, %v731
      %v806 = vpack.c.bf16 %v801, %v798
      %v807 = vlaneseq
      %v808 = vand.u32 %v807, 127
      %vm809 = vcmp.lt.s32.totalorder %v808, 10
      %vm810 = vcmask 64512
      %v812 = vsel %vm810, %v804, 0
      %v815 = vsel %vm810, %v805, 0
      %817 = vmatprep.subr.bf16.mxu0 0
      %818 = vmatpush1.bf16.xpose.msra.mxu0 %v815
      %819 = vmatprep.subr.bf16.mxu0 0
      %820 = vmatpush1.bf16.xpose.msra.mxu0 0
      %821 = vmatprep.subr.bf16.mxu0 0
      %822 = vmatpush1.bf16.xpose.msra.mxu0 0
      %823 = vmatprep.subr.bf16.mxu0 0
      %824 = vmatpush1.bf16.xpose.msra.mxu0 0
      %825 = vmatprep.subr.bf16.mxu0 0
      %826 = vmatpush1.bf16.xpose.msra.mxu0 0
      %827 = vmatprep.subr.bf16.mxu0 0
      %828 = vmatpush1.bf16.xpose.msra.mxu0 0
      %829 = vmatprep.subr.bf16.mxu0 0
      %830 = vmatpush1.bf16.xpose.msra.mxu0 0
      %831 = vmatprep.subr.bf16.mxu0 0
      %832 = vmatpush1.bf16.xpose.msra.mxu0 0
      %833 = vmatprep.subr.bf16.mxu0 0
      %834 = vmatpush1.bf16.xpose.msra.mxu0 0
      %835 = vmatprep.subr.bf16.mxu0 0
      %836 = vmatpush1.bf16.xpose.msra.mxu0 0
      %837 = vmatprep.subr.bf16.mxu0 0
      %838 = vmatpush1.bf16.xpose.msra.mxu0 0
      %839 = vmatprep.subr.bf16.mxu0 0
      %840 = vmatpush1.bf16.xpose.msra.mxu0 0
      %841 = vmatprep.subr.bf16.mxu0 0
      %842 = vmatpush1.bf16.xpose.msra.mxu0 0
      %843 = vmatprep.subr.bf16.mxu0 0
      %844 = vmatpush1.bf16.xpose.msra.mxu0 0
      %845 = vmatprep.subr.bf16.mxu0 0
      %846 = vmatpush1.bf16.xpose.msra.mxu0 0
      %847 = vmatprep.subr.bf16.mxu0 0
      %848 = vmatpush1.bf16.xpose.msra.mxu0 0
      %849 = vmatprep.mubr.bf16.mxu0 0
      %850 = vmatmul.mubr.bf16.gmra.mrb[0].mxu0 %v812
      %v851 = vpop.f32.mrb[0].mxu0
      %v852 = vadd.f32 0.0, %v851
      %v853 = vpop.f32.mrb[0].mxu0
      %v854 = vpop.f32.mrb[0].mxu0
      %v855 = vadd.f32 0.0, %v854
      %v856 = vpop.f32.mrb[0].mxu0
      %857 = vdwg.mxu0
      %v858 = vsel %vm809, %v852, -1e+30
      %v859 = vsel %vm809, %v855, -1e+30
      %vm860 = vcmask 130048
      %v861 = vsel %vm860, %v858, -inf
      %862 = vmax.xlane.f32.xlu0 %v861
      %v863 = vpop.xlane.xlu0 %862
      %v864 = vsel %vm860, %v859, -inf
      %865 = vmax.xlane.f32.xlu0 %v864
      %v866 = vpop.xlane.xlu0 %865
      %v867 = vsub.f32 %v858, %v863
      %v868 = vsub.f32 %v859, %v866
      %v869 = vmul.f32 %v867, 1.442695
      %v870 = vpow.pop %v869
      %v871 = vmul.f32 %v868, 1.442695
      %v872 = vpow.pop %v871
      %v873 = vsel %vm860, %v870, 0.0
      %874 = vadd.xlane.f32.xlu0 %v873
      %v875 = vpop.xlane.xlu0 %874
      %v876 = vsel %vm860, %v872, 0.0
      %877 = vadd.xlane.f32.xlu0 %v876
      %v878 = vpop.xlane.xlu0 %877
      %v879 = vpack.c.bf16 %v872, %v870
      %v881 = vsel %vm860, %v879, 0
      %883 = vmatprep.subr.bf16.mxu0 0
      %884 = vmatpush1.bf16.msra.mxu0 %v806
      %885 = vmatprep.subr.bf16.mxu0 0
      %886 = vmatpush1.bf16.msra.mxu0 0
      %887 = vmatprep.subr.bf16.mxu0 0
      %888 = vmatpush1.bf16.msra.mxu0 0
      %889 = vmatprep.subr.bf16.mxu0 0
      %890 = vmatpush1.bf16.msra.mxu0 0
      %891 = vmatprep.subr.bf16.mxu0 0
      %892 = vmatpush1.bf16.msra.mxu0 0
      %893 = vmatprep.subr.bf16.mxu0 0
      %894 = vmatpush1.bf16.msra.mxu0 0
      %895 = vmatprep.subr.bf16.mxu0 0
      %896 = vmatpush1.bf16.msra.mxu0 0
      %897 = vmatprep.subr.bf16.mxu0 0
      %898 = vmatpush1.bf16.msra.mxu0 0
      %899 = vmatprep.subr.bf16.mxu0 0
      %900 = vmatpush1.bf16.msra.mxu0 0
      %901 = vmatprep.subr.bf16.mxu0 0
      %902 = vmatpush1.bf16.msra.mxu0 0
      %903 = vmatprep.subr.bf16.mxu0 0
      %904 = vmatpush1.bf16.msra.mxu0 0
      %905 = vmatprep.subr.bf16.mxu0 0
      %906 = vmatpush1.bf16.msra.mxu0 0
      %907 = vmatprep.subr.bf16.mxu0 0
      %908 = vmatpush1.bf16.msra.mxu0 0
      %909 = vmatprep.subr.bf16.mxu0 0
      %910 = vmatpush1.bf16.msra.mxu0 0
      %911 = vmatprep.subr.bf16.mxu0 0
      %912 = vmatpush1.bf16.msra.mxu0 0
      %913 = vmatprep.subr.bf16.mxu0 0
      %914 = vmatpush1.bf16.msra.mxu0 0
      %915 = vmatprep.mubr.bf16.mxu0 0
      %916 = vmatmul.mubr.bf16.gmra.mrb[0].mxu0 %v881
      %v917 = vpop.f32.mrb[0].mxu0
      %v918 = vadd.f32 0.0, %v917
      %v919 = vpop.f32.mrb[0].mxu0
      %v920 = vpop.f32.mrb[0].mxu0
      %v921 = vadd.f32 0.0, %v920
      %v922 = vpop.f32.mrb[0].mxu0
      %923 = vdwg.mxu0
      %v924 = vrcp.pop %v875
      %v925 = vrcp.pop %v878
      %v926 = vmul.f32 %v918, %v924
      %v927 = vmul.f32 %v921, %v925
      %v928 = vpack.c.bf16 %v927, %v926
      %929 = vst.msk [vmem:[#allocation2] sm:$0xff] %vm810, %v928
      %931 = vrot.lane.b32.xlu0 %v804, 120
      %v932 = vpop.permute.xlu0 %931
      %934 = vrot.lane.b32.xlu0 %v805, 120
      %v935 = vpop.permute.xlu0 %934
      %v937 = vsel %vm810, %v932, 0
      %v940 = vsel %vm810, %v935, 0
      %942 = vmatprep.subr.bf16.mxu0 0
      %943 = vmatpush1.bf16.xpose.msra.mxu0 %v940
      %944 = vmatprep.subr.bf16.mxu0 0
      %945 = vmatpush1.bf16.xpose.msra.mxu0 0
      %946 = vmatprep.subr.bf16.mxu0 0
      %947 = vmatpush1.bf16.xpose.msra.mxu0 0
      %948 = vmatprep.subr.bf16.mxu0 0
      %949 = vmatpush1.bf16.xpose.msra.mxu0 0
      %950 = vmatprep.subr.bf16.mxu0 0
      %951 = vmatpush1.bf16.xpose.msra.mxu0 0
      %952 = vmatprep.subr.bf16.mxu0 0
      %953 = vmatpush1.bf16.xpose.msra.mxu0 0
      %954 = vmatprep.subr.bf16.mxu0 0
      %955 = vmatpush1.bf16.xpose.msra.mxu0 0
      %956 = vmatprep.subr.bf16.mxu0 0
      %957 = vmatpush1.bf16.xpose.msra.mxu0 0
      %958 = vmatprep.subr.bf16.mxu0 0
      %959 = vmatpush1.bf16.xpose.msra.mxu0 0
      %960 = vmatprep.subr.bf16.mxu0 0
      %961 = vmatpush1.bf16.xpose.msra.mxu0 0
      %962 = vmatprep.subr.bf16.mxu0 0
      %963 = vmatpush1.bf16.xpose.msra.mxu0 0
      %964 = vmatprep.subr.bf16.mxu0 0
      %965 = vmatpush1.bf16.xpose.msra.mxu0 0
      %966 = vmatprep.subr.bf16.mxu0 0
      %967 = vmatpush1.bf16.xpose.msra.mxu0 0
      %968 = vmatprep.subr.bf16.mxu0 0
      %969 = vmatpush1.bf16.xpose.msra.mxu0 0
      %970 = vmatprep.subr.bf16.mxu0 0
      %971 = vmatpush1.bf16.xpose.msra.mxu0 0
      %972 = vmatprep.subr.bf16.mxu0 0
      %973 = vmatpush1.bf16.xpose.msra.mxu0 0
      %974 = vmatprep.mubr.bf16.mxu0 0
      %975 = vmatmul.mubr.bf16.gmra.mrb[0].mxu0 %v937
      %v976 = vpop.f32.mrb[0].mxu0
      %v977 = vadd.f32 0.0, %v976
      %v978 = vpop.f32.mrb[0].mxu0
      %v979 = vpop.f32.mrb[0].mxu0
      %v980 = vadd.f32 0.0, %v979
      %v981 = vpop.f32.mrb[0].mxu0
      %982 = vdwg.mxu0
      %v983 = vsel %vm809, %v977, -1e+30
      %v984 = vsel %vm809, %v980, -1e+30
      %v985 = vsel %vm860, %v983, -inf
      %986 = vmax.xlane.f32.xlu0 %v985
      %v987 = vpop.xlane.xlu0 %986
      %v988 = vsel %vm860, %v984, -inf
      %989 = vmax.xlane.f32.xlu0 %v988
      %v990 = vpop.xlane.xlu0 %989
      %v991 = vsub.f32 %v983, %v987
      %v992 = vsub.f32 %v984, %v990
      %v993 = vmul.f32 %v991, 1.442695
      %v994 = vpow.pop %v993
      %v995 = vmul.f32 %v992, 1.442695
      %v996 = vpow.pop %v995
      %v997 = vsel %vm860, %v994, 0.0
      %998 = vadd.xlane.f32.xlu0 %v997
      %v999 = vpop.xlane.xlu0 %998
      %v1000 = vsel %vm860, %v996, 0.0
      %1001 = vadd.xlane.f32.xlu0 %v1000
      %v1002 = vpop.xlane.xlu0 %1001
      %v1003 = vpack.c.bf16 %v996, %v994
      %1005 = vrot.lane.b32.xlu0 %v806, 120
      %v1006 = vpop.permute.xlu0 %1005
      %v1009 = vsel %vm860, %v1003, 0
      %1011 = vmatprep.subr.bf16.mxu0 0
      %1012 = vmatpush1.bf16.msra.mxu0 %v1006
      %1013 = vmatprep.subr.bf16.mxu0 0
      %1014 = vmatpush1.bf16.msra.mxu0 0
      %1015 = vmatprep.subr.bf16.mxu0 0
      %1016 = vmatpush1.bf16.msra.mxu0 0
      %1017 = vmatprep.subr.bf16.mxu0 0
      %1018 = vmatpush1.bf16.msra.mxu0 0
      %1019 = vmatprep.subr.bf16.mxu0 0
      %1020 = vmatpush1.bf16.msra.mxu0 0
      %1021 = vmatprep.subr.bf16.mxu0 0
      %1022 = vmatpush1.bf16.msra.mxu0 0
      %1023 = vmatprep.subr.bf16.mxu0 0
      %1024 = vmatpush1.bf16.msra.mxu0 0
      %1025 = vmatprep.subr.bf16.mxu0 0
      %1026 = vmatpush1.bf16.msra.mxu0 0
      %1027 = vmatprep.subr.bf16.mxu0 0
      %1028 = vmatpush1.bf16.msra.mxu0 0
      %1029 = vmatprep.subr.bf16.mxu0 0
      %1030 = vmatpush1.bf16.msra.mxu0 0
      %1031 = vmatprep.subr.bf16.mxu0 0
      %1032 = vmatpush1.bf16.msra.mxu0 0
      %1033 = vmatprep.subr.bf16.mxu0 0
      %1034 = vmatpush1.bf16.msra.mxu0 0
      %1035 = vmatprep.subr.bf16.mxu0 0
      %1036 = vmatpush1.bf16.msra.mxu0 0
      %1037 = vmatprep.subr.bf16.mxu0 0
      %1038 = vmatpush1.bf16.msra.mxu0 0
      %1039 = vmatprep.subr.bf16.mxu0 0
      %1040 = vmatpush1.bf16.msra.mxu0 0
      %1041 = vmatprep.subr.bf16.mxu0 0
      %1042 = vmatpush1.bf16.msra.mxu0 0
      %1043 = vmatprep.mubr.bf16.mxu0 0
      %1044 = vmatmul.mubr.bf16.gmra.mrb[0].mxu0 %v1009
      %v1045 = vpop.f32.mrb[0].mxu0
      %v1046 = vadd.f32 0.0, %v1045
      %v1047 = vpop.f32.mrb[0].mxu0
      %v1048 = vpop.f32.mrb[0].mxu0
      %v1049 = vadd.f32 0.0, %v1048
      %v1050 = vpop.f32.mrb[0].mxu0
      %1051 = vdwg.mxu0
      %v1052 = vrcp.pop %v999
      %v1053 = vrcp.pop %v1002
      %v1054 = vmul.f32 %v1046, %v1052
      %v1055 = vmul.f32 %v1049, %v1053
      %v1056 = vpack.c.bf16 %v1055, %v1054
      %1058 = vrot.lane.b32.xlu0 %v1056, 8
      %v1059 = vpop.permute.xlu0 %1058
      %vm1061 = vcmask 130112
      %1062 = vst.msk [vmem:[#allocation2] sm:$0xff] %vm1061, %v1059
      %1063 = vrot.lane.b32.xlu0 %v804, 112
      %v1064 = vpop.permute.xlu0 %1063
      %1065 = vrot.lane.b32.xlu0 %v805, 112
      %v1066 = vpop.permute.xlu0 %1065
      %v1068 = vsel %vm810, %v1064, 0
      %v1071 = vsel %vm810, %v1066, 0
      %1073 = vmatprep.subr.bf16.mxu0 0
      %1074 = vmatpush1.bf16.xpose.msra.mxu0 %v1071
      %1075 = vmatprep.subr.bf16.mxu0 0
      %1076 = vmatpush1.bf16.xpose.msra.mxu0 0
      %1077 = vmatprep.subr.bf16.mxu0 0
      %1078 = vmatpush1.bf16.xpose.msra.mxu0 0
      %1079 = vmatprep.subr.bf16.mxu0 0
      %1080 = vmatpush1.bf16.xpose.msra.mxu0 0
      %1081 = vmatprep.subr.bf16.mxu0 0
      %1082 = vmatpush1.bf16.xpose.msra.mxu0 0
      %1083 = vmatprep.subr.bf16.mxu0 0
      %1084 = vmatpush1.bf16.xpose.msra.mxu0 0
      %1085 = vmatprep.subr.bf16.mxu0 0
      %1086 = vmatpush1.bf16.xpose.msra.mxu0 0
      %1087 = vmatprep.subr.bf16.mxu0 0
      %1088 = vmatpush1.bf16.xpose.msra.mxu0 0
      %1089 = vmatprep.subr.bf16.mxu0 0
      %1090 = vmatpush1.bf16.xpose.msra.mxu0 0
      %1091 = vmatprep.subr.bf16.mxu0 0
      %1092 = vmatpush1.bf16.xpose.msra.mxu0 0
      %1093 = vmatprep.subr.bf16.mxu0 0
      %1094 = vmatpush1.bf16.xpose.msra.mxu0 0
      %1095 = vmatprep.subr.bf16.mxu0 0
      %1096 = vmatpush1.bf16.xpose.msra.mxu0 0
      %1097 = vmatprep.subr.bf16.mxu0 0
      %1098 = vmatpush1.bf16.xpose.msra.mxu0 0
      %1099 = vmatprep.subr.bf16.mxu0 0
      %1100 = vmatpush1.bf16.xpose.msra.mxu0 0
      %1101 = vmatprep.subr.bf16.mxu0 0
      %1102 = vmatpush1.bf16.xpose.msra.mxu0 0
      %1103 = vmatprep.subr.bf16.mxu0 0
      %1104 = vmatpush1.bf16.xpose.msra.mxu0 0
      %1105 = vmatprep.mubr.bf16.mxu0 0
      %1106 = vmatmul.mubr.bf16.gmra.mrb[0].mxu0 %v1068
      %v1107 = vpop.f32.mrb[0].mxu0
      %v1108 = vadd.f32 0.0, %v1107
      %v1109 = vpop.f32.mrb[0].mxu0
      %v1110 = vpop.f32.mrb[0].mxu0
      %v1111 = vadd.f32 0.0, %v1110
      %v1112 = vpop.f32.mrb[0].mxu0
      %1113 = vdwg.mxu0
      %v1114 = vsel %vm809, %v1108, -1e+30
      %v1115 = vsel %vm809, %v1111, -1e+30
      %v1116 = vsel %vm860, %v1114, -inf
      %1117 = vmax.xlane.f32.xlu0 %v1116
      %v1118 = vpop.xlane.xlu0 %1117
      %v1119 = vsel %vm860, %v1115, -inf
      %1120 = vmax.xlane.f32.xlu0 %v1119
      %v1121 = vpop.xlane.xlu0 %1120
      %v1122 = vsub.f32 %v1114, %v1118
      %v1123 = vsub.f32 %v1115, %v1121
      %v1124 = vmul.f32 %v1122, 1.442695
      %v1125 = vpow.pop %v1124
      %v1126 = vmul.f32 %v1123, 1.442695
      %v1127 = vpow.pop %v1126
      %v1128 = vsel %vm860, %v1125, 0.0
      %1129 = vadd.xlane.f32.xlu0 %v1128
      %v1130 = vpop.xlane.xlu0 %1129
      %v1131 = vsel %vm860, %v1127, 0.0
      %1132 = vadd.xlane.f32.xlu0 %v1131
      %v1133 = vpop.xlane.xlu0 %1132
      %v1134 = vpack.c.bf16 %v1127, %v1125
      %1135 = vrot.lane.b32.xlu0 %v806, 112
      %v1136 = vpop.permute.xlu0 %1135
      %v1139 = vsel %vm860, %v1134, 0
      %1141 = vmatprep.subr.bf16.mxu0 0
      %1142 = vmatpush1.bf16.msra.mxu0 %v1136
      %1143 = vmatprep.subr.bf16.mxu0 0
      %1144 = vmatpush1.bf16.msra.mxu0 0
      %1145 = vmatprep.subr.bf16.mxu0 0
      %1146 = vmatpush1.bf16.msra.mxu0 0
      %1147 = vmatprep.subr.bf16.mxu0 0
      %1148 = vmatpush1.bf16.msra.mxu0 0
      %1149 = vmatprep.subr.bf16.mxu0 0
      %1150 = vmatpush1.bf16.msra.mxu0 0
      %1151 = vmatprep.subr.bf16.mxu0 0
      %1152 = vmatpush1.bf16.msra.mxu0 0
      %1153 = vmatprep.subr.bf16.mxu0 0
      %1154 = vmatpush1.bf16.msra.mxu0 0
      %1155 = vmatprep.subr.bf16.mxu0 0
      %1156 = vmatpush1.bf16.msra.mxu0 0
      %1157 = vmatprep.subr.bf16.mxu0 0
      %1158 = vmatpush1.bf16.msra.mxu0 0
      %1159 = vmatprep.subr.bf16.mxu0 0
      %1160 = vmatpush1.bf16.msra.mxu0 0
      %1161 = vmatprep.subr.bf16.mxu0 0
      %1162 = vmatpush1.bf16.msra.mxu0 0
      %1163 = vmatprep.subr.bf16.mxu0 0
      %1164 = vmatpush1.bf16.msra.mxu0 0
      %1165 = vmatprep.subr.bf16.mxu0 0
      %1166 = vmatpush1.bf16.msra.mxu0 0
      %1167 = vmatprep.subr.bf16.mxu0 0
      %1168 = vmatpush1.bf16.msra.mxu0 0
      %1169 = vmatprep.subr.bf16.mxu0 0
      %1170 = vmatpush1.bf16.msra.mxu0 0
      %1171 = vmatprep.subr.bf16.mxu0 0
      %1172 = vmatpush1.bf16.msra.mxu0 0
      %1173 = vmatprep.mubr.bf16.mxu0 0
      %1174 = vmatmul.mubr.bf16.gmra.mrb[0].mxu0 %v1139
      %v1175 = vpop.f32.mrb[0].mxu0
      %v1176 = vadd.f32 0.0, %v1175
      %v1177 = vpop.f32.mrb[0].mxu0
      %v1178 = vpop.f32.mrb[0].mxu0
      %v1179 = vadd.f32 0.0, %v1178
      %v1180 = vpop.f32.mrb[0].mxu0
      %1181 = vdwg.mxu0
      %v1182 = vrcp.pop %v1130
      %v1183 = vrcp.pop %v1133
      %v1184 = vmul.f32 %v1176, %v1182
      %v1185 = vmul.f32 %v1179, %v1183
      %v1186 = vpack.c.bf16 %v1185, %v1184
      %1188 = vrot.lane.b32.xlu0 %v1186, 16
      %v1189 = vpop.permute.xlu0 %1188
      %vm1191 = vcmask 195712
      %1192 = vst.msk [vmem:[#allocation2] sm:$0xff] %vm1191, %v1189
      %1193 = vrot.lane.b32.xlu0 %v804, 104
      %v1194 = vpop.permute.xlu0 %1193
      %1195 = vrot.lane.b32.xlu0 %v805, 104
      %v1196 = vpop.permute.xlu0 %1195
      %v1198 = vsel %vm810, %v1194, 0
      %v1201 = vsel %vm810, %v1196, 0
      %1203 = vmatprep.subr.bf16.mxu0 0
      %1204 = vmatpush1.bf16.xpose.msra.mxu0 %v1201
      %1205 = vmatprep.subr.bf16.mxu0 0
      %1206 = vmatpush1.bf16.xpose.msra.mxu0 0
      %1207 = vmatprep.subr.bf16.mxu0 0
      %1208 = vmatpush1.bf16.xpose.msra.mxu0 0
      %1209 = vmatprep.subr.bf16.mxu0 0
      %1210 = vmatpush1.bf16.xpose.msra.mxu0 0
      %1211 = vmatprep.subr.bf16.mxu0 0
      %1212 = vmatpush1.bf16.xpose.msra.mxu0 0
      %1213 = vmatprep.subr.bf16.mxu0 0
      %1214 = vmatpush1.bf16.xpose.msra.mxu0 0
      %1215 = vmatprep.subr.bf16.mxu0 0
      %1216 = vmatpush1.bf16.xpose.msra.mxu0 0
      %1217 = vmatprep.subr.bf16.mxu0 0
      %1218 = vmatpush1.bf16.xpose.msra.mxu0 0
      %1219 = vmatprep.subr.bf16.mxu0 0
      %1220 = vmatpush1.bf16.xpose.msra.mxu0 0
      %1221 = vmatprep.subr.bf16.mxu0 0
      %1222 = vmatpush1.bf16.xpose.msra.mxu0 0
      %1223 = vmatprep.subr.bf16.mxu0 0
      %1224 = vmatpush1.bf16.xpose.msra.mxu0 0
      %1225 = vmatprep.subr.bf16.mxu0 0
      %1226 = vmatpush1.bf16.xpose.msra.mxu0 0
      %1227 = vmatprep.subr.bf16.mxu0 0
      %1228 = vmatpush1.bf16.xpose.msra.mxu0 0
      %1229 = vmatprep.subr.bf16.mxu0 0
      %1230 = vmatpush1.bf16.xpose.msra.mxu0 0
      %1231 = vmatprep.subr.bf16.mxu0 0
      %1232 = vmatpush1.bf16.xpose.msra.mxu0 0
      %1233 = vmatprep.subr.bf16.mxu0 0
      %1234 = vmatpush1.bf16.xpose.msra.mxu0 0
      %1235 = vmatprep.mubr.bf16.mxu0 0
      %1236 = vmatmul.mubr.bf16.gmra.mrb[0].mxu0 %v1198
      %v1237 = vpop.f32.mrb[0].mxu0
      %v1238 = vadd.f32 0.0, %v1237
      %v1239 = vpop.f32.mrb[0].mxu0
      %v1240 = vpop.f32.mrb[0].mxu0
      %v1241 = vadd.f32 0.0, %v1240
      %v1242 = vpop.f32.mrb[0].mxu0
      %1243 = vdwg.mxu0
      %v1244 = vsel %vm809, %v1238, -1e+30
      %v1245 = vsel %vm809, %v1241, -1e+30
      %v1246 = vsel %vm860, %v1244, -inf
      %1247 = vmax.xlane.f32.xlu0 %v1246
      %v1248 = vpop.xlane.xlu0 %1247
      %v1249 = vsel %vm860, %v1245, -inf
      %1250 = vmax.xlane.f32.xlu0 %v1249
      %v1251 = vpop.xlane.xlu0 %1250
      %v1252 = vsub.f32 %v1244, %v1248
      %v1253 = vsub.f32 %v1245, %v1251
      %v1254 = vmul.f32 %v1252, 1.442695
      %v1255 = vpow.pop %v1254
      %v1256 = vmul.f32 %v1253, 1.442695
      %v1257 = vpow.pop %v1256
      %v1258 = vsel %vm860, %v1255, 0.0
      %1259 = vadd.xlane.f32.xlu0 %v1258
      %v1260 = vpop.xlane.xlu0 %1259
      %v1261 = vsel %vm860, %v1257, 0.0
      %1262 = vadd.xlane.f32.xlu0 %v1261
      %v1263 = vpop.xlane.xlu0 %1262
      %v1264 = vpack.c.bf16 %v1257, %v1255
      %1265 = vrot.lane.b32.xlu0 %v806, 104
      %v1266 = vpop.permute.xlu0 %1265
      %v1269 = vsel %vm860, %v1264, 0
      %1271 = vmatprep.subr.bf16.mxu0 0
      %1272 = vmatpush1.bf16.msra.mxu0 %v1266
      %1273 = vmatprep.subr.bf16.mxu0 0
      %1274 = vmatpush1.bf16.msra.mxu0 0
      %1275 = vmatprep.subr.bf16.mxu0 0
      %1276 = vmatpush1.bf16.msra.mxu0 0
      %1277 = vmatprep.subr.bf16.mxu0 0
      %1278 = vmatpush1.bf16.msra.mxu0 0
      %1279 = vmatprep.subr.bf16.mxu0 0
      %1280 = vmatpush1.bf16.msra.mxu0 0
      %1281 = vmatprep.subr.bf16.mxu0 0
      %1282 = vmatpush1.bf16.msra.mxu0 0
      %1283 = vmatprep.subr.bf16.mxu0 0
      %1284 = vmatpush1.bf16.msra.mxu0 0
      %1285 = vmatprep.subr.bf16.mxu0 0
      %1286 = vmatpush1.bf16.msra.mxu0 0
      %1287 = vmatprep.subr.bf16.mxu0 0
      %1288 = vmatpush1.bf16.msra.mxu0 0
      %1289 = vmatprep.subr.bf16.mxu0 0
      %1290 = vmatpush1.bf16.msra.mxu0 0
      %1291 = vmatprep.subr.bf16.mxu0 0
      %1292 = vmatpush1.bf16.msra.mxu0 0
      %1293 = vmatprep.subr.bf16.mxu0 0
      %1294 = vmatpush1.bf16.msra.mxu0 0
      %1295 = vmatprep.subr.bf16.mxu0 0
      %1296 = vmatpush1.bf16.msra.mxu0 0
      %1297 = vmatprep.subr.bf16.mxu0 0
      %1298 = vmatpush1.bf16.msra.mxu0 0
      %1299 = vmatprep.subr.bf16.mxu0 0
      %1300 = vmatpush1.bf16.msra.mxu0 0
      %1301 = vmatprep.subr.bf16.mxu0 0
      %1302 = vmatpush1.bf16.msra.mxu0 0
      %1303 = vmatprep.mubr.bf16.mxu0 0
      %1304 = vmatmul.mubr.bf16.gmra.mrb[0].mxu0 %v1269
      %v1305 = vpop.f32.mrb[0].mxu0
      %v1306 = vadd.f32 0.0, %v1305
      %v1307 = vpop.f32.mrb[0].mxu0
      %v1308 = vpop.f32.mrb[0].mxu0
      %v1309 = vadd.f32 0.0, %v1308
      %v1310 = vpop.f32.mrb[0].mxu0
      %1311 = vdwg.mxu0
      %v1312 = vrcp.pop %v1260
      %v1313 = vrcp.pop %v1263
      %v1314 = vmul.f32 %v1306, %v1312
      %v1315 = vmul.f32 %v1309, %v1313
      %v1316 = vpack.c.bf16 %v1315, %v1314
      %1318 = vrot.lane.b32.xlu0 %v1316, 24
      %v1319 = vpop.permute.xlu0 %1318
      %vm1321 = vcmask 261312
      %1322 = vst.msk [vmem:[#allocation2] sm:$0xff] %vm1321, %v1319
      %v1323 = vld [vmem:[#allocation2] sm:$0xff]
      %v1324 = vld [vmem:[%s8] sm:$0xf]
      %v1325 = vld [vmem:[%s8 + $0x4] sm:$0xf]
      %v1326 = vld [vmem:[%s8 + $0x8] sm:$0xf]
      %v1327 = vld [vmem:[%s8 + $0xc] sm:$0xf]
      %v1328 = vld [vmem:[%s9] sm:$0x1]
      %v1330 = vlaneseq
      %v1331 = vshrl.u32 %v1330, 7
      %v1332 = vsub.s32 0, %v1331
      %v1333 = vrot.slane %v1328, %v1332
      %v1339 = vunpack.c.l.b16 %v1324
      %v1340 = vunpack.c.l.b16 %v1325
      %v1341 = vunpack.c.l.b16 %v1326
      %v1342 = vunpack.c.l.b16 %v1327
      %v1343 = vpack.c.b16 %v1340, %v1339
      %v1344 = vpack.c.b16 %v1342, %v1341
      %v1348 = vsel %vm628, %v1323, 0
      %1350 = vmatprep.subr.bf16.mxu0 0
      %1351 = vmatpush1.bf16.msra.mxu0 %v1343
      %1352 = vmatprep.subr.bf16.mxu0 0
      %1353 = vmatpush1.bf16.msra.mxu0 %v1344
      %1354 = vmatprep.subr.bf16.mxu0 0
      %1355 = vmatpush1.bf16.msra.mxu0 0
      %1356 = vmatprep.subr.bf16.mxu0 0
      %1357 = vmatpush1.bf16.msra.mxu0 0
      %1358 = vmatprep.subr.bf16.mxu0 0
      %1359 = vmatpush1.bf16.msra.mxu0 0
      %1360 = vmatprep.subr.bf16.mxu0 0
      %1361 = vmatpush1.bf16.msra.mxu0 0
      %1362 = vmatprep.subr.bf16.mxu0 0
      %1363 = vmatpush1.bf16.msra.mxu0 0
      %1364 = vmatprep.subr.bf16.mxu0 0
      %1365 = vmatpush1.bf16.msra.mxu0 0
      %1366 = vmatprep.subr.bf16.mxu0 0
      %1367 = vmatpush1.bf16.msra.mxu0 0
      %1368 = vmatprep.subr.bf16.mxu0 0
      %1369 = vmatpush1.bf16.msra.mxu0 0
      %1370 = vmatprep.subr.bf16.mxu0 0
      %1371 = vmatpush1.bf16.msra.mxu0 0
      %1372 = vmatprep.subr.bf16.mxu0 0
      %1373 = vmatpush1.bf16.msra.mxu0 0
      %1374 = vmatprep.subr.bf16.mxu0 0
      %1375 = vmatpush1.bf16.msra.mxu0 0
      %1376 = vmatprep.subr.bf16.mxu0 0
      %1377 = vmatpush1.bf16.msra.mxu0 0
      %1378 = vmatprep.subr.bf16.mxu0 0
      %1379 = vmatpush1.bf16.msra.mxu0 0
      %1380 = vmatprep.subr.bf16.mxu0 0
      %1381 = vmatpush1.bf16.msra.mxu0 0
      %1382 = vmatprep.mubr.bf16.mxu0 0
      %1383 = vmatmul.mubr.bf16.gmra.mrb[0].mxu0 %v1348
      %v1384 = vpop.f32.mrb[0].mxu0
      %v1385 = vadd.f32 %v1333, %v1384
      %v1386 = vpop.f32.mrb[0].mxu0
      %v1387 = vpop.f32.mrb[0].mxu0
      %v1388 = vadd.f32 %v1333, %v1387
      %v1389 = vpop.f32.mrb[0].mxu0
      %1390 = vdwg.mxu0
      %v1391 = vadd.f32 %v597, %v1385
      %v1392 = vadd.f32 %v598, %v1388
      %v1393 = vld [vmem:[%s14] sm:$0x1]
      %v1394 = vld [vmem:[%s15] sm:$0x1]
      %v1395 = vsel %vm628, %v1391, 0.0
      %1396 = vadd.xlane.f32.xlu0 %v1395
      %v1397 = vpop.xlane.xlu0 %1396
      %v1398 = vsel %vm628, %v1392, 0.0
      %1399 = vadd.xlane.f32.xlu0 %v1398
      %v1400 = vpop.xlane.xlu0 %1399
      %v1401 = vrcp.pop 32.0
      %v1402 = vmul.f32 %v1397, %v1401
      %v1403 = vmul.f32 %v1400, %v1401
      %v1404 = vsub.f32 %v1391, %v1402
      %v1405 = vsub.f32 %v1392, %v1403
      %v1406 = vmul.f32 %v1404, %v1404
      %v1407 = vmul.f32 %v1405, %v1405
      %v1408 = vsel %vm628, %v1406, 0.0
      %1409 = vadd.xlane.f32.xlu0 %v1408
      %v1410 = vpop.xlane.xlu0 %1409
      %v1411 = vsel %vm628, %v1407, 0.0
      %1412 = vadd.xlane.f32.xlu0 %v1411
      %v1413 = vpop.xlane.xlu0 %1412
      %v1414 = vmul.f32 %v1410, %v1401
      %v1415 = vmul.f32 %v1413, %v1401
      %v1416 = vadd.f32 %v1414, 1e-05
      %v1417 = vadd.f32 %v1415, 1e-05
      %v1418 = vrsqrt.pop %v1416
      %v1419 = vrsqrt.pop %v1417
      %v1420 = vmul.f32 %v1404, %v1418
      %v1421 = vmul.f32 %v1405, %v1419
      %v1423 = vlaneseq
      %v1424 = vshrl.u32 %v1423, 7
      %v1425 = vsub.s32 0, %v1424
      %v1426 = vrot.slane %v1393, %v1425
      %v1428 = vmul.f32 %v1420, %v1426
      %v1429 = vmul.f32 %v1421, %v1426
      %v1431 = vlaneseq
      %v1432 = vshrl.u32 %v1431, 7
      %v1433 = vsub.s32 0, %v1432
      %v1434 = vrot.slane %v1394, %v1433
      %v1436 = vadd.f32 %v1428, %v1434
      %v1437 = vadd.f32 %v1429, %v1434
      %v1438 = vpack.c.bf16 %v1437, %v1436
      %v1439 = vld [vmem:[%s10] sm:$0xf]
      %v1440 = vld [vmem:[%s10 + $0x4] sm:$0xf]
      %v1441 = vld [vmem:[%s10 + $0x8] sm:$0xf]
      %v1442 = vld [vmem:[%s10 + $0xc] sm:$0xf]
      %v1443 = vld [vmem:[%s11] sm:$0x1]
      %v1445 = vlaneseq
      %v1446 = vshrl.u32 %v1445, 7
      %v1447 = vsub.s32 0, %v1446
      %v1448 = vrot.slane %v1443, %v1447
      %v1454 = vunpack.c.l.b16 %v1439
      %v1455 = vunpack.c.l.b16 %v1440
      %v1456 = vunpack.c.l.b16 %v1441
      %v1457 = vunpack.c.l.b16 %v1442
      %v1458 = vpack.c.b16 %v1455, %v1454
      %v1459 = vpack.c.b16 %v1457, %v1456
      %v1463 = vsel %vm628, %v1438, 0
      %1465 = vmatprep.subr.bf16.mxu0 0
      %1466 = vmatpush1.bf16.msra.mxu0 %v1458
      %1467 = vmatprep.subr.bf16.mxu0 0
      %1468 = vmatpush1.bf16.msra.mxu0 %v1459
      %1469 = vmatprep.subr.bf16.mxu0 0
      %1470 = vmatpush1.bf16.msra.mxu0 0
      %1471 = vmatprep.subr.bf16.mxu0 0
      %1472 = vmatpush1.bf16.msra.mxu0 0
      %1473 = vmatprep.subr.bf16.mxu0 0
      %1474 = vmatpush1.bf16.msra.mxu0 0
      %1475 = vmatprep.subr.bf16.mxu0 0
      %1476 = vmatpush1.bf16.msra.mxu0 0
      %1477 = vmatprep.subr.bf16.mxu0 0
      %1478 = vmatpush1.bf16.msra.mxu0 0
      %1479 = vmatprep.subr.bf16.mxu0 0
      %1480 = vmatpush1.bf16.msra.mxu0 0
      %1481 = vmatprep.subr.bf16.mxu0 0
      %1482 = vmatpush1.bf16.msra.mxu0 0
      %1483 = vmatprep.subr.bf16.mxu0 0
      %1484 = vmatpush1.bf16.msra.mxu0 0
      %1485 = vmatprep.subr.bf16.mxu0 0
      %1486 = vmatpush1.bf16.msra.mxu0 0
      %1487 = vmatprep.subr.bf16.mxu0 0
      %1488 = vmatpush1.bf16.msra.mxu0 0
      %1489 = vmatprep.subr.bf16.mxu0 0
      %1490 = vmatpush1.bf16.msra.mxu0 0
      %1491 = vmatprep.subr.bf16.mxu0 0
      %1492 = vmatpush1.bf16.msra.mxu0 0
      %1493 = vmatprep.subr.bf16.mxu0 0
      %1494 = vmatpush1.bf16.msra.mxu0 0
      %1495 = vmatprep.subr.bf16.mxu0 0
      %1496 = vmatpush1.bf16.msra.mxu0 0
      %1497 = vmatprep.mubr.bf16.mxu0 0
      %1498 = vmatmul.mubr.bf16.gmra.mrb[0].mxu0 %v1463
      %v1499 = vpop.f32.mrb[0].mxu0
      %v1500 = vadd.f32 %v1448, %v1499
      %v1501 = vpop.f32.mrb[0].mxu0
      %v1502 = vpop.f32.mrb[0].mxu0
      %v1503 = vadd.f32 %v1448, %v1502
      %v1504 = vpop.f32.mrb[0].mxu0
      %1505 = vdwg.mxu0
      %v1506 = vmax.f32 %v1500, 0.0
      %v1507 = vmax.f32 %v1503, 0.0
      %v1508 = vpack.c.bf16 %v1507, %v1506
      %v1509 = vld [vmem:[%s12] sm:$0xf]
      %v1510 = vld [vmem:[%s12 + $0x4] sm:$0xf]
      %v1511 = vld [vmem:[%s12 + $0x8] sm:$0xf]
      %v1512 = vld [vmem:[%s12 + $0xc] sm:$0xf]
      %v1513 = vld [vmem:[%s12 + $0x10] sm:$0xf]
      %v1514 = vld [vmem:[%s12 + $0x14] sm:$0xf]
      %v1515 = vld [vmem:[%s12 + $0x18] sm:$0xf]
      %v1516 = vld [vmem:[%s12 + $0x1c] sm:$0xf]
      %v1517 = vld [vmem:[%s13] sm:$0x1]
      %v1519 = vlaneseq
      %v1520 = vshrl.u32 %v1519, 7
      %v1521 = vsub.s32 0, %v1520
      %v1522 = vrot.slane %v1517, %v1521
      %v1532 = vunpack.c.l.b16 %v1509
      %v1533 = vunpack.c.l.b16 %v1510
      %v1534 = vunpack.c.l.b16 %v1511
      %v1535 = vunpack.c.l.b16 %v1512
      %v1536 = vunpack.c.l.b16 %v1513
      %v1537 = vunpack.c.l.b16 %v1514
      %v1538 = vunpack.c.l.b16 %v1515
      %v1539 = vunpack.c.l.b16 %v1516
      %v1540 = vpack.c.b16 %v1533, %v1532
      %v1541 = vpack.c.b16 %v1535, %v1534
      %v1542 = vpack.c.b16 %v1537, %v1536
      %v1543 = vpack.c.b16 %v1539, %v1538
      %vm1548 = vcmask 523264
      %v1550 = vsel %vm1548, %v1508, 0
      %1552 = vmatprep.subr.bf16.mxu0 0
      %1553 = vmatpush1.bf16.msra.mxu0 %v1540
      %1554 = vmatprep.subr.bf16.mxu0 0
      %1555 = vmatpush1.bf16.msra.mxu0 %v1541
      %1556 = vmatprep.subr.bf16.mxu0 0
      %1557 = vmatpush1.bf16.msra.mxu0 %v1542
      %1558 = vmatprep.subr.bf16.mxu0 0
      %1559 = vmatpush1.bf16.msra.mxu0 %v1543
      %1560 = vmatprep.subr.bf16.mxu0 0
      %1561 = vmatpush1.bf16.msra.mxu0 0
      %1562 = vmatprep.subr.bf16.mxu0 0
      %1563 = vmatpush1.bf16.msra.mxu0 0
      %1564 = vmatprep.subr.bf16.mxu0 0
      %1565 = vmatpush1.bf16.msra.mxu0 0
      %1566 = vmatprep.subr.bf16.mxu0 0
      %1567 = vmatpush1.bf16.msra.mxu0 0
      %1568 = vmatprep.subr.bf16.mxu0 0
      %1569 = vmatpush1.bf16.msra.mxu0 0
      %1570 = vmatprep.subr.bf16.mxu0 0
      %1571 = vmatpush1.bf16.msra.mxu0 0
      %1572 = vmatprep.subr.bf16.mxu0 0
      %1573 = vmatpush1.bf16.msra.mxu0 0
      %1574 = vmatprep.subr.bf16.mxu0 0
      %1575 = vmatpush1.bf16.msra.mxu0 0
      %1576 = vmatprep.subr.bf16.mxu0 0
      %1577 = vmatpush1.bf16.msra.mxu0 0
      %1578 = vmatprep.subr.bf16.mxu0 0
      %1579 = vmatpush1.bf16.msra.mxu0 0
      %1580 = vmatprep.subr.bf16.mxu0 0
      %1581 = vmatpush1.bf16.msra.mxu0 0
      %1582 = vmatprep.subr.bf16.mxu0 0
      %1583 = vmatpush1.bf16.msra.mxu0 0
      %1584 = vmatprep.mubr.bf16.mxu0 0
      %1585 = vmatmul.mubr.bf16.gmra.mrb[0].mxu0 %v1550
      %v1586 = vpop.f32.mrb[0].mxu0
      %v1587 = vadd.f32 %v1522, %v1586
      %v1588 = vpop.f32.mrb[0].mxu0
      %v1589 = vpop.f32.mrb[0].mxu0
      %v1590 = vadd.f32 %v1522, %v1589
      %v1591 = vpop.f32.mrb[0].mxu0
      %1592 = vdwg.mxu0
      %v1593 = vadd.f32 %v1436, %v1587
      %v1594 = vadd.f32 %v1437, %v1590
      %v1595 = vld [vmem:[%s16] sm:$0x1]
      %v1596 = vld [vmem:[%s17] sm:$0x1]
      %v1597 = vsel %vm628, %v1593, 0.0
      %1598 = vadd.xlane.f32.xlu0 %v1597
      %v1599 = vpop.xlane.xlu0 %1598
      %v1600 = vsel %vm628, %v1594, 0.0
      %1601 = vadd.xlane.f32.xlu0 %v1600
      %v1602 = vpop.xlane.xlu0 %1601
      %v1603 = vmul.f32 %v1599, %v1401
      %v1604 = vmul.f32 %v1602, %v1401
      %v1605 = vsub.f32 %v1593, %v1603
      %v1606 = vsub.f32 %v1594, %v1604
      %v1607 = vmul.f32 %v1605, %v1605
      %v1608 = vmul.f32 %v1606, %v1606
      %v1609 = vsel %vm628, %v1607, 0.0
      %1610 = vadd.xlane.f32.xlu0 %v1609
      %v1611 = vpop.xlane.xlu0 %1610
      %v1612 = vsel %vm628, %v1608, 0.0
      %1613 = vadd.xlane.f32.xlu0 %v1612
      %v1614 = vpop.xlane.xlu0 %1613
      %v1615 = vmul.f32 %v1611, %v1401
      %v1616 = vmul.f32 %v1614, %v1401
      %v1617 = vadd.f32 %v1615, 1e-05
      %v1618 = vadd.f32 %v1616, 1e-05
      %v1619 = vrsqrt.pop %v1617
      %v1620 = vrsqrt.pop %v1618
      %v1621 = vmul.f32 %v1605, %v1619
      %v1622 = vmul.f32 %v1606, %v1620
      %v1624 = vlaneseq
      %v1625 = vshrl.u32 %v1624, 7
      %v1626 = vsub.s32 0, %v1625
      %v1627 = vrot.slane %v1595, %v1626
      %v1629 = vmul.f32 %v1621, %v1627
      %v1630 = vmul.f32 %v1622, %v1627
      %v1632 = vlaneseq
      %v1633 = vshrl.u32 %v1632, 7
      %v1634 = vsub.s32 0, %v1633
      %v1635 = vrot.slane %v1596, %v1634
      %v1637 = vadd.f32 %v1629, %v1635
      %v1638 = vadd.f32 %v1630, %v1635
      %1639 = vst.msk [vmem:[%s595] sm:$0xff] %vm628, %v1637
      %1640 = vst.msk [vmem:[%s595 + $0x8] sm:$0xff] %vm628, %v1638
      %p1641 = scmp.lt.s32.totalorder %s29, 1
      %s1642 = scalar_select %p1641, %s29, 1
      %s1643 = smul.addr %s1642, 2
      %s1644 = smul.addr %s1643, 8
      %s1645 = scalar_lea.vmem %s18, %s1644
      // Predicated region
      $region93: #{encoder_layer_forward.1} parent=91 // pred_check
        %p1646 = pneg %p435
      $region94: #{encoder_layer_forward.1} parent=91 // pred_check_branch
        %1648 = sbr.rel (%p1646) target = $region96
      $region95: #{encoder_layer_forward.1} parent=91 // pred_region
        _
      $region96: #{encoder_layer_forward.1} parent=91 // pred_fallthru
        _
    $region92: #{encoder_layer_forward.1} parent=5 // pred_fallthru
      _
    %p1649 = scmp.le.s32.totalorder 2, %s24
    // Predicated region
    $region97: #{encoder_layer_forward.1} parent=5 // pred_check
      %p1650 = pneg %p1649
    $region98: #{encoder_layer_forward.1} parent=5 // pred_check_branch
      %1652 = sbr.rel (%p1650) target = $region100
    $region99: #{encoder_layer_forward.1} parent=5 // pred_region
      %s1653 = ssub.s32 %s24, 2
      // Predicated region
      $region101: #{encoder_layer_forward.1} parent=99 // pred_check
        %p1654 = pneg %p441
      $region102: #{encoder_layer_forward.1} parent=99 // pred_check_branch
        %1656 = sbr.rel (%p1654) target = $region104
      $region103: #{encoder_layer_forward.1} parent=99 // pred_region
        %p1657 = scmp.lt.s32.totalorder %s30, 1
        %s1658 = scalar_select %p1657, %s30, 1
        %s1659 = smul.addr %s1658, 2
        %s1660 = smul.addr %s1659, 8
        %s1661 = scalar_lea.vmem %s18, %s1660
      $region104: #{encoder_layer_forward.1} parent=99 // pred_fallthru
        _
    $region100: #{encoder_layer_forward.1} parent=5 // pred_fallthru
      _
  $region6: #{encoder_layer_forward.1} parent=0 // loop_footer
    %s28 = sadd.s32 1, %s24
  $region7: #{encoder_layer_forward.1} parent=0 // loop_footer_branch
    %23 = sbr.rel target = $region3
  $region8: #{encoder_layer_forward.1} parent=0 // loop_exit
    _

</llo_original>
